<compile_context>
chip_gen: v7x
topology: tpu7x:2x2x1
jax: 0.10.0
libtpu: 0.0.40
codegen_flags: <defaults>
</compile_context>

<pallas_src>
import functools

import jax
import jax.numpy as jnp
from jax.experimental import pallas as pl
from jax.experimental.pallas import tpu as pltpu

# ---- scaled-down "roberta-base" config (synthetic deterministic init) ----
VOCAB = 100
MAX_POS = 40
HIDDEN = 128           # stands in for 768 (lane-dense: multiple of 128)
N_HEADS = 2
HEAD_DIM = HIDDEN // N_HEADS
INTERMEDIATE = 256     # stands in for 3072
N_LAYERS = 2
NUM_LABELS = 5
CLS_PAD = 128          # classifier lane padding (logits sliced to NUM_LABELS outside)
LN_EPS = 1e-5
PAD_TOKEN_ID = 1       # RoBERTa position ids start at pad_token_id + 1


def _layernorm(x, g, b, eps):
    mu = jnp.mean(x, axis=-1, keepdims=True)
    var = jnp.mean(jnp.square(x - mu), axis=-1, keepdims=True)
    return (x - mu) * jax.lax.rsqrt(var + eps) * g + b


# --------------------- fully fused forward kernel ----------------------------
# One grid step == one transformer layer.  The sequence-output block (constant
# block index across the layer axis) is the layer-resident activation; the
# classifier + optional CE loss run in the last-layer epilogue.

def _fused_kernel(*refs, batch, seq, n_heads, head_dim, eps, num_labels, with_loss):
    if with_loss:
        (x_in_ref, bias_ref, emb_g_ref, emb_b_ref,
         wqkv_ref, bqkv_ref, wo_ref, bo_ref,
         ln1_g_ref, ln1_b_ref, w1_ref, b1_ref, w2_ref, b2_ref,
         ln2_g_ref, ln2_b_ref, cls_w_ref, cls_b_ref, lab_ref,
         o_seq_ref, o_logits_ref, o_loss_ref) = refs
    else:
        (x_in_ref, bias_ref, emb_g_ref, emb_b_ref,
         wqkv_ref, bqkv_ref, wo_ref, bo_ref,
         ln1_g_ref, ln1_b_ref, w1_ref, b1_ref, w2_ref, b2_ref,
         ln2_g_ref, ln2_b_ref, cls_w_ref, cls_b_ref,
         o_seq_ref, o_logits_ref) = refs
        lab_ref = None
        o_loss_ref = None

    l = pl.program_id(0)
    hidden = n_heads * head_dim
    m = batch * seq
    scale = 1.0 / (head_dim ** 0.5)

    # Layer 0: embedding LayerNorm; the output block doubles as the resident
    # activation accumulator (no VMEM scratch).
    @pl.when(l == 0)
    def _():
        o_seq_ref[...] = _layernorm(x_in_ref[...], emb_g_ref[...], emb_b_ref[...], eps)

    x = o_seq_ref[...]                                       # [B*S, H] f32 (resident)

    # ---- fused QKV projection (bf16 operands, f32 accumulation) ----
    qkv = jnp.dot(x.astype(jnp.bfloat16), wqkv_ref[0],
                  preferred_element_type=jnp.float32) + bqkv_ref[0]   # [B*S, 3H]

    # ---- head-batched attention: fold heads onto the leading batch axis ----
    def head_split(base):
        # per-head lane slice -> [1, B*S, HD] -> stack heads on leading axis
        parts = [qkv[:, base + h * head_dim: base + (h + 1) * head_dim
                     ].reshape(1, m, head_dim) for h in range(n_heads)]
        stacked = jnp.concatenate(parts, axis=0)              # [NH, B*S, HD]
        return stacked.reshape(n_heads * batch, seq, head_dim)  # (h, b) major

    q = head_split(0)
    k = head_split(hidden)
    v = head_split(2 * hidden)

    # additive attention mask, replicated per head: [NH*B, 1, S]
    att_bias = jnp.concatenate([bias_ref[...]] * n_heads, axis=0)[:, None, :]

    s = jnp.einsum("bqd,bkd->bqk",
                   q.astype(jnp.bfloat16), k.astype(jnp.bfloat16),
                   preferred_element_type=jnp.float32) * scale + att_bias
    s = s - jnp.max(s, axis=-1, keepdims=True)
    p = jnp.exp(s)
    p = p * pl.reciprocal(jnp.sum(p, axis=-1, keepdims=True), approx=True)
    ctx = jnp.einsum("bqk,bkd->bqd",
                     p.astype(jnp.bfloat16), v.astype(jnp.bfloat16),
                     preferred_element_type=jnp.float32)       # [NH*B, S, HD]

    # merge heads back onto the lane axis: [NH*B, S, HD] -> [B*S, NH*HD]
    ctx = ctx.reshape(n_heads, m, head_dim)
    ctx = jnp.concatenate([ctx[h] for h in range(n_heads)], axis=-1)   # [B*S, H]

    # ---- attention output projection + residual + LayerNorm ----
    attn_out = jnp.dot(ctx.astype(jnp.bfloat16), wo_ref[0],
                       preferred_element_type=jnp.float32) + bo_ref[0]
    x = _layernorm(attn_out + x, ln1_g_ref[0], ln1_b_ref[0], eps)

    # ---- FFN + residual + LayerNorm ----
    hmid = jnp.dot(x.astype(jnp.bfloat16), w1_ref[0],
                   preferred_element_type=jnp.float32) + b1_ref[0]
    # TODO(synk): HF RoBERTa uses exact (erf) GELU; tanh approximation kept for
    # guaranteed Mosaic lowering.
    hmid = jax.nn.gelu(hmid, approximate=True)
    ffn = jnp.dot(hmid.astype(jnp.bfloat16), w2_ref[0],
                  preferred_element_type=jnp.float32) + b2_ref[0]
    x = _layernorm(ffn + x, ln2_g_ref[0], ln2_b_ref[0], eps)

    o_seq_ref[...] = x

    # ---- last-layer epilogue: fused classifier (+ optional CE loss) ----
    @pl.when(l == pl.num_programs(0) - 1)
    def _():
        # CLS tokens = rows 0, S, 2S, ... of the resident activation.
        # nn.Dropout(0.1) before the classifier is identity at inference time.
        cls_tok = jnp.concatenate(
            [x[b * seq:b * seq + 1, :] for b in range(batch)], axis=0)   # [B, H]
        logits = jnp.dot(cls_tok.astype(jnp.bfloat16), cls_w_ref[...],
                         preferred_element_type=jnp.float32) + cls_b_ref[...]
        o_logits_ref[...] = logits                                       # [B, CLS_PAD]
        if with_loss:
            bsz, npad = logits.shape
            col = jax.lax.broadcasted_iota(jnp.int32, (bsz, npad), 1)
            valid = col < num_labels
            # nn.CrossEntropyLoss (mean reduction) over the valid lanes
            z = jnp.where(valid, logits, -1e30)
            z = z - jnp.max(z, axis=-1, keepdims=True)
            logp = z - jnp.log(jnp.sum(jnp.exp(z), axis=-1, keepdims=True))
            onehot = (col == lab_ref[...]).astype(jnp.float32)
            nll = -jnp.sum(onehot * logp, axis=-1, keepdims=True)        # [B, 1]
            o_loss_ref[...] = jnp.mean(nll, axis=0, keepdims=True)       # [1, 1]


def _cost_estimate(batch, seq, with_loss):
    m = batch * seq
    H, I, L, NH, HD = HIDDEN, INTERMEDIATE, N_LAYERS, N_HEADS, HEAD_DIM
    per_layer_flops = (2 * m * H * 3 * H                      # qkv projection
                       + 2 * batch * NH * seq * seq * HD * 2  # scores + context
                       + 2 * m * H * H                        # attn output proj
                       + 2 * m * H * I + 2 * m * I * H)       # FFN
    flops = L * per_layer_flops + 2 * batch * H * CLS_PAD
    trans = L * (batch * NH * seq * seq + m * I)              # softmax exp + gelu
    if with_loss:
        trans += batch * CLS_PAD
    weight_bytes = L * ((H * 3 * H + H * H + H * I + I * H) * 2      # bf16 weights
                        + (3 * H + H + I + H + 4 * H) * 4)           # f32 biases/LN
    io_bytes = (m * H * 4 + batch * seq * 4 + 2 * H * 4              # emb, mask, LN
                + H * CLS_PAD * 2 + CLS_PAD * 4                      # classifier
                + m * H * 4 + batch * CLS_PAD * 4                    # outputs
                + (batch * 4 + 4 if with_loss else 0))
    return pl.CostEstimate(flops=flops, transcendentals=trans,
                           bytes_accessed=weight_bytes + io_bytes)


def fused_forward(params, emb, bias, batch, seq, labels=None):
    H, I, L = HIDDEN, INTERMEDIATE, N_LAYERS
    m = batch * seq
    with_loss = labels is not None

    def const(shape):
        return pl.BlockSpec(shape, lambda l: (0,) * len(shape))

    def per_layer(d1, d2):
        return pl.BlockSpec((1, d1, d2), lambda l: (l, 0, 0))

    in_specs = [
        const((m, H)),                 # embeddings (pre-LN)
        const((batch, seq)),           # additive attention-mask bias [B,S]
        const((1, H)), const((1, H)),  # emb_ln g/b
        per_layer(H, 3 * H), per_layer(1, 3 * H),   # wqkv / bqkv
        per_layer(H, H), per_layer(1, H),           # wo / bo
        per_layer(1, H), per_layer(1, H),           # ln1 g/b
        per_layer(H, I), per_layer(1, I),           # w1 / b1
        per_layer(I, H), per_layer(1, H),           # w2 / b2
        per_layer(1, H), per_layer(1, H),           # ln2 g/b
        const((H, CLS_PAD)), const((1, CLS_PAD)),   # classifier weight/bias
    ]
    inputs = [emb, bias, params["emb_ln_g"], params["emb_ln_b"],
              params["wqkv"], params["bqkv"], params["wo"], params["bo"],
              params["ln1_g"], params["ln1_b"], params["w1"], params["b1"],
              params["w2"], params["b2"], params["ln2_g"], params["ln2_b"],
              params["cls_w"], params["cls_b"]]

    out_shapes = [jax.ShapeDtypeStruct((m, H), jnp.float32),          # sequence out
                  jax.ShapeDtypeStruct((batch, CLS_PAD), jnp.float32)]  # padded logits
    out_specs = [pl.BlockSpec((m, H), lambda l: (0, 0)),
                 pl.BlockSpec((batch, CLS_PAD), lambda l: (0, 0))]
    if with_loss:
        in_specs.append(const((batch, 1)))
        inputs.append(labels.reshape(batch, 1).astype(jnp.int32))
        out_shapes.append(jax.ShapeDtypeStruct((1, 1), jnp.float32))
        out_specs.append(pl.BlockSpec((1, 1), lambda l: (0, 0)))

    kernel = functools.partial(_fused_kernel, batch=batch, seq=seq,
                               n_heads=N_HEADS, head_dim=HEAD_DIM, eps=LN_EPS,
                               num_labels=NUM_LABELS, with_loss=with_loss)

    # TODO(synk): for v7x add a leading "parallel" batch/row-tile grid axis
    # (second TensorCore) and tile w1/w2 over I when scaled to roberta-base
    # dims so the stacked-layer weights fit v7x's 64 MiB VMEM.
    return pl.pallas_call(
        kernel,
        out_shape=tuple(out_shapes),
        grid_spec=pltpu.PrefetchScalarGridSpec(
            num_scalar_prefetch=0,
            grid=(L,),
            in_specs=in_specs,
            out_specs=tuple(out_specs),
        ),
        compiler_params=pltpu.CompilerParams(
            dimension_semantics=("arbitrary",),
            vmem_limit_bytes=32 * 1024 * 1024,
        ),
        cost_estimate=_cost_estimate(batch, seq, with_loss),
    )(*inputs)


# --------------------------- parameters --------------------------------------

def init_params(key):
    def nrm(k, shape, scale=0.02, dtype=jnp.float32):
        return (scale * jax.random.normal(k, shape, dtype=jnp.float32)).astype(dtype)

    keys = jax.random.split(key, 8)
    L, H, I = N_LAYERS, HIDDEN, INTERMEDIATE
    # TODO(synk): pretrained 'cardiffnlp/twitter-roberta-base-emotion' weights are
    # replaced with deterministic synthetic init (no checkpoint loading).
    params = {
        "word_emb": nrm(keys[0], (VOCAB, H)),
        "pos_emb": nrm(keys[1], (MAX_POS, H)),
        "type_emb": nrm(keys[2], (2, H)),
        "emb_ln_g": jnp.ones((1, H), jnp.float32),
        "emb_ln_b": jnp.zeros((1, H), jnp.float32),
        # stacked per-layer weights; MXU operands stored in bf16
        "wqkv": nrm(keys[3], (L, H, 3 * H), dtype=jnp.bfloat16),
        "bqkv": jnp.zeros((L, 1, 3 * H), jnp.float32),
        "wo": nrm(keys[4], (L, H, H), dtype=jnp.bfloat16),
        "bo": jnp.zeros((L, 1, H), jnp.float32),
        "ln1_g": jnp.ones((L, 1, H), jnp.float32),
        "ln1_b": jnp.zeros((L, 1, H), jnp.float32),
        "w1": nrm(keys[5], (L, H, I), dtype=jnp.bfloat16),
        "b1": jnp.zeros((L, 1, I), jnp.float32),
        "w2": nrm(keys[6], (L, I, H), dtype=jnp.bfloat16),
        "b2": jnp.zeros((L, 1, H), jnp.float32),
        "ln2_g": jnp.ones((L, 1, H), jnp.float32),
        "ln2_b": jnp.zeros((L, 1, H), jnp.float32),
        # classifier weight zero-padded on the lane dim (lane-dense logits store;
        # the CE kernel also masks lanes >= NUM_LABELS, so both stay correct)
        "cls_w": jnp.zeros((H, CLS_PAD), jnp.bfloat16).at[:, :NUM_LABELS].set(
            nrm(keys[7], (H, NUM_LABELS), dtype=jnp.bfloat16)),
        "cls_b": jnp.zeros((1, CLS_PAD), jnp.float32),
    }
    return params


# --------------------------- forward pass ------------------------------------

def custom_model_forward(params, input_ids, attention_mask, labels=None):
    B, S = input_ids.shape

    # embeddings: gathers are plain-JAX glue; everything downstream (embedding
    # LayerNorm, encoder layers, classifier, CE loss) is one pallas_call.
    word = jnp.take(params["word_emb"], input_ids, axis=0)                 # [B,S,H]
    mask = attention_mask.astype(jnp.int32)
    # RoBERTa padding-aware position ids: pads -> PAD_TOKEN_ID, tokens -> cumsum.
    pos_ids = jnp.cumsum(mask, axis=1) * mask + PAD_TOKEN_ID               # [B,S]
    pos = jnp.take(params["pos_emb"], pos_ids, axis=0)                     # [B,S,H]
    typ = params["type_emb"][0][None, None, :]                             # [1,1,H]
    emb = (word + pos + typ).reshape(B * S, HIDDEN)

    # additive attention-mask bias kept at [B, S]; broadcast inside the kernel.
    bias = (1.0 - attention_mask.astype(jnp.float32)) * -1e9               # [B,S]

    outs = fused_forward(params, emb, bias, B, S, labels)
    if labels is None:
        _seq_out, logits_pad = outs
        return logits_pad[:, :NUM_LABELS], None
    _seq_out, logits_pad, loss = outs
    return logits_pad[:, :NUM_LABELS], loss[0, 0]


# --------------------------- driver -------------------------------------------

if __name__ == "__main__":
    key = jax.random.PRNGKey(0)
    pk, ik, lk = jax.random.split(key, 3)
    params = init_params(pk)

    B, S = 2, 8
    input_ids = jax.random.randint(ik, (B, S), 0, VOCAB, dtype=jnp.int32)
    attention_mask = jnp.ones((B, S), jnp.int32).at[1, 6:].set(0)
    labels = jax.random.randint(lk, (B,), 0, NUM_LABELS, dtype=jnp.int32)

    # training-style call (logits + CE loss, fully fused)
    fwd_train = jax.jit(custom_model_forward)
    logits, loss = fwd_train(params, input_ids, attention_mask, labels)
    jax.block_until_ready((logits, loss))
    assert logits.shape == (B, NUM_LABELS)
    assert loss.shape == ()
    assert bool(jnp.isfinite(loss))

    # inference call (logits only; no labels input, no CE work in the kernel)
    fwd_infer = jax.jit(lambda p, i, m: custom_model_forward(p, i, m, None))
    logits_i, loss_i = fwd_infer(params, input_ids, attention_mask)
    jax.block_until_ready(logits_i)
    assert logits_i.shape == (B, NUM_LABELS)
    assert loss_i is None

    print("KERNEL_OK")
</pallas_src>

<mosaic_0001>
module attributes {stable_mosaic.version = 11 : i64} {
  func.func @_fused_kernel(%arg0: i32, %arg1: memref<16x128xf32, #tpu.memory_space<vmem>>, %arg2: memref<2x8xf32, #tpu.memory_space<vmem>>, %arg3: memref<1x128xf32, #tpu.memory_space<vmem>>, %arg4: memref<1x128xf32, #tpu.memory_space<vmem>>, %arg5: memref<1x128x384xbf16, #tpu.memory_space<vmem>>, %arg6: memref<1x1x384xf32, #tpu.memory_space<vmem>>, %arg7: memref<1x128x128xbf16, #tpu.memory_space<vmem>>, %arg8: memref<1x1x128xf32, #tpu.memory_space<vmem>>, %arg9: memref<1x1x128xf32, #tpu.memory_space<vmem>>, %arg10: memref<1x1x128xf32, #tpu.memory_space<vmem>>, %arg11: memref<1x128x256xbf16, #tpu.memory_space<vmem>>, %arg12: memref<1x1x256xf32, #tpu.memory_space<vmem>>, %arg13: memref<1x256x128xbf16, #tpu.memory_space<vmem>>, %arg14: memref<1x1x128xf32, #tpu.memory_space<vmem>>, %arg15: memref<1x1x128xf32, #tpu.memory_space<vmem>>, %arg16: memref<1x1x128xf32, #tpu.memory_space<vmem>>, %arg17: memref<128x128xbf16, #tpu.memory_space<vmem>>, %arg18: memref<1x128xf32, #tpu.memory_space<vmem>>, %arg19: memref<2x1xi32, #tpu.memory_space<vmem>>, %arg20: memref<16x128xf32, #tpu.memory_space<vmem>>, %arg21: memref<2x128xf32, #tpu.memory_space<vmem>>, %arg22: memref<1x1xf32, #tpu.memory_space<vmem>>) attributes {dimension_semantics = [#tpu.dimension_semantics<arbitrary>], iteration_bounds = array<i64: 2>, scalar_prefetch = 0 : i64, scratch_operands = 0 : i64, tpu.core_type = #tpu.core_type<tc>, window_params = [{pipeline_mode = #tpu.pipeline_mode<synchronous>, transform_indices = @transform_0, window_bounds = array<i64: 16, 128>}, {pipeline_mode = #tpu.pipeline_mode<synchronous>, transform_indices = @transform_1, window_bounds = array<i64: 2, 8>}, {pipeline_mode = #tpu.pipeline_mode<synchronous>, transform_indices = @transform_2, window_bounds = array<i64: 1, 128>}, {pipeline_mode = #tpu.pipeline_mode<synchronous>, transform_indices = @transform_3, window_bounds = array<i64: 1, 128>}, {transform_indices = @transform_4, window_bounds = array<i64: 1, 128, 384>}, {transform_indices = @transform_5, window_bounds = array<i64: 1, 1, 384>}, {transform_indices = @transform_6, window_bounds = array<i64: 1, 128, 128>}, {transform_indices = @transform_7, window_bounds = array<i64: 1, 1, 128>}, {transform_indices = @transform_8, window_bounds = array<i64: 1, 1, 128>}, {transform_indices = @transform_9, window_bounds = array<i64: 1, 1, 128>}, {transform_indices = @transform_10, window_bounds = array<i64: 1, 128, 256>}, {transform_indices = @transform_11, window_bounds = array<i64: 1, 1, 256>}, {transform_indices = @transform_12, window_bounds = array<i64: 1, 256, 128>}, {transform_indices = @transform_13, window_bounds = array<i64: 1, 1, 128>}, {transform_indices = @transform_14, window_bounds = array<i64: 1, 1, 128>}, {transform_indices = @transform_15, window_bounds = array<i64: 1, 1, 128>}, {pipeline_mode = #tpu.pipeline_mode<synchronous>, transform_indices = @transform_16, window_bounds = array<i64: 128, 128>}, {pipeline_mode = #tpu.pipeline_mode<synchronous>, transform_indices = @transform_17, window_bounds = array<i64: 1, 128>}, {pipeline_mode = #tpu.pipeline_mode<synchronous>, transform_indices = @transform_18, window_bounds = array<i64: 2, 1>}, {pipeline_mode = #tpu.pipeline_mode<synchronous>, transform_indices = @transform_19, window_bounds = array<i64: 16, 128>}, {pipeline_mode = #tpu.pipeline_mode<synchronous>, transform_indices = @transform_20, window_bounds = array<i64: 2, 128>}, {pipeline_mode = #tpu.pipeline_mode<synchronous>, transform_indices = @transform_21, window_bounds = array<i64: 1, 1>}]} {
    %c0_i32 = arith.constant 0 : i32
    %0 = arith.cmpi eq, %arg0, %c0_i32 : i32
    %1 = arith.extui %0 : i1 to i32
    %c0_i32_0 = arith.constant 0 : i32
    %2 = arith.cmpi ne, %1, %c0_i32_0 : i32
    scf.if %2 {
      %c0_65 = arith.constant 0 : index
      %c0_66 = arith.constant 0 : index
      %154 = vector.load %arg1[%c0_65, %c0_66] : memref<16x128xf32, #tpu.memory_space<vmem>>, vector<16x128xf32>
      %c0_67 = arith.constant 0 : index
      %c0_68 = arith.constant 0 : index
      %155 = vector.load %arg3[%c0_67, %c0_68] : memref<1x128xf32, #tpu.memory_space<vmem>>, vector<1x128xf32>
      %c0_69 = arith.constant 0 : index
      %c0_70 = arith.constant 0 : index
      %156 = vector.load %arg4[%c0_69, %c0_70] : memref<1x128xf32, #tpu.memory_space<vmem>>, vector<1x128xf32>
      %cst_71 = arith.constant dense<0.000000e+00> : vector<16xf32>
      %157 = vector.multi_reduction <add>, %154, %cst_71 [1] : vector<16x128xf32> to vector<16xf32>
      %158 = vector.shape_cast %157 : vector<16xf32> to vector<16x1xf32>
      %cst_72 = arith.constant 1.280000e+02 : f32
      %159 = vector.broadcast %cst_72 : f32 to vector<16x1xf32>
      %160 = arith.divf %158, %159 : vector<16x1xf32>
      %161 = vector.broadcast %160 : vector<16x1xf32> to vector<16x128xf32>
      %162 = arith.subf %154, %161 : vector<16x128xf32>
      %163 = arith.mulf %162, %162 : vector<16x128xf32>
      %cst_73 = arith.constant dense<0.000000e+00> : vector<16xf32>
      %164 = vector.multi_reduction <add>, %163, %cst_73 [1] : vector<16x128xf32> to vector<16xf32>
      %165 = vector.shape_cast %164 : vector<16xf32> to vector<16x1xf32>
      %cst_74 = arith.constant 1.280000e+02 : f32
      %166 = vector.broadcast %cst_74 : f32 to vector<16x1xf32>
      %167 = arith.divf %165, %166 : vector<16x1xf32>
      %168 = vector.broadcast %160 : vector<16x1xf32> to vector<16x128xf32>
      %169 = arith.subf %154, %168 : vector<16x128xf32>
      %cst_75 = arith.constant 9.99999974E-6 : f32
      %170 = vector.broadcast %cst_75 : f32 to vector<16x1xf32>
      %171 = arith.addf %167, %170 : vector<16x1xf32>
      %172 = math.rsqrt %171 : vector<16x1xf32>
      %173 = vector.broadcast %172 : vector<16x1xf32> to vector<16x128xf32>
      %174 = arith.mulf %169, %173 : vector<16x128xf32>
      %175 = vector.broadcast %155 : vector<1x128xf32> to vector<16x128xf32>
      %176 = arith.mulf %174, %175 : vector<16x128xf32>
      %177 = vector.broadcast %156 : vector<1x128xf32> to vector<16x128xf32>
      %178 = arith.addf %176, %177 : vector<16x128xf32>
      %c0_76 = arith.constant 0 : index
      %c0_77 = arith.constant 0 : index
      %179 = vector.load %arg20[%c0_76, %c0_77] : memref<16x128xf32, #tpu.memory_space<vmem>>, vector<16x128xf32>
      tpu.vector_store %arg20[%c0_76, %c0_77], %178 {strides = array<i32>} : memref<16x128xf32, #tpu.memory_space<vmem>>, vector<16x128xf32>,
    } else {
    }
    %c0 = arith.constant 0 : index
    %c0_1 = arith.constant 0 : index
    %3 = vector.load %arg20[%c0, %c0_1] : memref<16x128xf32, #tpu.memory_space<vmem>>, vector<16x128xf32>
    %4 = arith.truncf %3 : vector<16x128xf32> to vector<16x128xbf16>
    %c0_2 = arith.constant 0 : index
    %c0_3 = arith.constant 0 : index
    %c0_4 = arith.constant 0 : index
    %5 = vector.load %arg5[%c0_2, %c0_3, %c0_4] : memref<1x128x384xbf16, #tpu.memory_space<vmem>>, vector<1x128x384xbf16>
    %6 = vector.shape_cast %5 : vector<1x128x384xbf16> to vector<128x384xbf16>
    %cst = arith.constant dense<0.000000e+00> : vector<16x384xf32>
    %7 = tpu.matmul %4, %6, %cst {dimension_numbers = #tpu.dot_dimension_numbers<[1], [0], [0], [1], [0, 0, 1, 1], [], []>} : vector<16x128xbf16>, vector<128x384xbf16>, vector<16x384xf32> -> vector<16x384xf32>
    %c0_5 = arith.constant 0 : index
    %c0_6 = arith.constant 0 : index
    %c0_7 = arith.constant 0 : index
    %8 = vector.load %arg6[%c0_5, %c0_6, %c0_7] : memref<1x1x384xf32, #tpu.memory_space<vmem>>, vector<1x1x384xf32>
    %9 = vector.shape_cast %8 : vector<1x1x384xf32> to vector<1x384xf32>
    %10 = vector.broadcast %9 : vector<1x384xf32> to vector<16x384xf32>
    %11 = arith.addf %7, %10 : vector<16x384xf32>
    %12 = vector.extract_strided_slice %11 {offsets = [0, 0], sizes = [16, 64], strides = [1, 1]} : vector<16x384xf32> to vector<16x64xf32>
    %13 = vector.shape_cast %12 : vector<16x64xf32> to vector<1x16x64xf32>
    %14 = vector.extract_strided_slice %11 {offsets = [0, 64], sizes = [16, 64], strides = [1, 1]} : vector<16x384xf32> to vector<16x64xf32>
    %15 = vector.shape_cast %14 : vector<16x64xf32> to vector<1x16x64xf32>
    %16 = tpu.concatenate %13, %15 in 0 : vector<1x16x64xf32>, vector<1x16x64xf32> -> vector<2x16x64xf32>
    %17 = vector.shape_cast %16 : vector<2x16x64xf32> to vector<4x8x64xf32>
    %18 = vector.extract_strided_slice %11 {offsets = [0, 128], sizes = [16, 64], strides = [1, 1]} : vector<16x384xf32> to vector<16x64xf32>
    %19 = vector.shape_cast %18 : vector<16x64xf32> to vector<1x16x64xf32>
    %20 = vector.extract_strided_slice %11 {offsets = [0, 192], sizes = [16, 64], strides = [1, 1]} : vector<16x384xf32> to vector<16x64xf32>
    %21 = vector.shape_cast %20 : vector<16x64xf32> to vector<1x16x64xf32>
    %22 = tpu.concatenate %19, %21 in 0 : vector<1x16x64xf32>, vector<1x16x64xf32> -> vector<2x16x64xf32>
    %23 = vector.shape_cast %22 : vector<2x16x64xf32> to vector<4x8x64xf32>
    %24 = vector.extract_strided_slice %11 {offsets = [0, 256], sizes = [16, 64], strides = [1, 1]} : vector<16x384xf32> to vector<16x64xf32>
    %25 = vector.shape_cast %24 : vector<16x64xf32> to vector<1x16x64xf32>
    %26 = vector.extract_strided_slice %11 {offsets = [0, 320], sizes = [16, 64], strides = [1, 1]} : vector<16x384xf32> to vector<16x64xf32>
    %27 = vector.shape_cast %26 : vector<16x64xf32> to vector<1x16x64xf32>
    %28 = tpu.concatenate %25, %27 in 0 : vector<1x16x64xf32>, vector<1x16x64xf32> -> vector<2x16x64xf32>
    %29 = vector.shape_cast %28 : vector<2x16x64xf32> to vector<4x8x64xf32>
    %c0_8 = arith.constant 0 : index
    %c0_9 = arith.constant 0 : index
    %30 = vector.load %arg2[%c0_8, %c0_9] : memref<2x8xf32, #tpu.memory_space<vmem>>, vector<2x8xf32>
    %31 = tpu.concatenate %30, %30 in 0 : vector<2x8xf32>, vector<2x8xf32> -> vector<4x8xf32>
    %32 = vector.shape_cast %31 : vector<4x8xf32> to vector<4x1x8xf32>
    %33 = arith.truncf %17 : vector<4x8x64xf32> to vector<4x8x64xbf16>
    %34 = arith.truncf %23 : vector<4x8x64xf32> to vector<4x8x64xbf16>
    "tpu.trace_start"() <{level = 10 : i32, message = "bqd,bkd->bqk"}> : () -> ()
    %cst_10 = arith.constant dense<0.000000e+00> : vector<4x8x8xf32>
    %35 = tpu.matmul %33, %34, %cst_10 {dimension_numbers = #tpu.dot_dimension_numbers<[2], [2], [1], [1], [0, 0, 0, 1, 1, 1], [0], [0]>} : vector<4x8x64xbf16>, vector<4x8x64xbf16>, vector<4x8x8xf32> -> vector<4x8x8xf32>
    "tpu.trace_stop"() : () -> ()
    %cst_11 = arith.constant 1.250000e-01 : f32
    %36 = vector.broadcast %cst_11 : f32 to vector<4x8x8xf32>
    %37 = arith.mulf %35, %36 : vector<4x8x8xf32>
    %38 = vector.broadcast %32 : vector<4x1x8xf32> to vector<4x8x8xf32>
    %39 = arith.addf %37, %38 : vector<4x8x8xf32>
    %cst_12 = arith.constant dense<0xFF800000> : vector<4x8xf32>
    %40 = vector.multi_reduction <maximumf>, %39, %cst_12 [2] : vector<4x8x8xf32> to vector<4x8xf32>
    %41 = vector.shape_cast %40 : vector<4x8xf32> to vector<4x8x1xf32>
    %42 = vector.broadcast %41 : vector<4x8x1xf32> to vector<4x8x8xf32>
    %43 = arith.subf %39, %42 : vector<4x8x8xf32>
    %44 = math.exp %43 : vector<4x8x8xf32>
    %cst_13 = arith.constant dense<0.000000e+00> : vector<4x8xf32>
    %45 = vector.multi_reduction <add>, %44, %cst_13 [2] : vector<4x8x8xf32> to vector<4x8xf32>
    %46 = vector.shape_cast %45 : vector<4x8xf32> to vector<4x8x1xf32>
    %47 = tpu.reciprocal %46 {approx = true} : vector<4x8x1xf32> -> vector<4x8x1xf32>
    %48 = vector.broadcast %47 : vector<4x8x1xf32> to vector<4x8x8xf32>
    %49 = arith.mulf %44, %48 : vector<4x8x8xf32>
    %50 = arith.truncf %49 : vector<4x8x8xf32> to vector<4x8x8xbf16>
    %51 = arith.truncf %29 : vector<4x8x64xf32> to vector<4x8x64xbf16>
    "tpu.trace_start"() <{level = 10 : i32, message = "bqk,bkd->bqd"}> : () -> ()
    %cst_14 = arith.constant dense<0.000000e+00> : vector<4x8x64xf32>
    %52 = tpu.matmul %50, %51, %cst_14 {dimension_numbers = #tpu.dot_dimension_numbers<[2], [1], [1], [2], [0, 0, 0, 1, 1, 2], [0], [0]>} : vector<4x8x8xbf16>, vector<4x8x64xbf16>, vector<4x8x64xf32> -> vector<4x8x64xf32>
    "tpu.trace_stop"() : () -> ()
    %53 = vector.shape_cast %52 : vector<4x8x64xf32> to vector<2x16x64xf32>
    %54 = vector.extract_strided_slice %53 {offsets = [0, 0, 0], sizes = [1, 16, 64], strides = [1, 1, 1]} : vector<2x16x64xf32> to vector<1x16x64xf32>
    %55 = vector.shape_cast %54 : vector<1x16x64xf32> to vector<16x64xf32>
    %56 = vector.extract_strided_slice %53 {offsets = [1, 0, 0], sizes = [1, 16, 64], strides = [1, 1, 1]} : vector<2x16x64xf32> to vector<1x16x64xf32>
    %57 = vector.shape_cast %56 : vector<1x16x64xf32> to vector<16x64xf32>
    %58 = tpu.concatenate %55, %57 in 1 : vector<16x64xf32>, vector<16x64xf32> -> vector<16x128xf32>
    %59 = arith.truncf %58 : vector<16x128xf32> to vector<16x128xbf16>
    %c0_15 = arith.constant 0 : index
    %c0_16 = arith.constant 0 : index
    %c0_17 = arith.constant 0 : index
    %60 = vector.load %arg7[%c0_15, %c0_16, %c0_17] : memref<1x128x128xbf16, #tpu.memory_space<vmem>>, vector<1x128x128xbf16>
    %61 = vector.shape_cast %60 : vector<1x128x128xbf16> to vector<128x128xbf16>
    %cst_18 = arith.constant dense<0.000000e+00> : vector<16x128xf32>
    %62 = tpu.matmul %59, %61, %cst_18 {dimension_numbers = #tpu.dot_dimension_numbers<[1], [0], [0], [1], [0, 0, 1, 1], [], []>} : vector<16x128xbf16>, vector<128x128xbf16>, vector<16x128xf32> -> vector<16x128xf32>
    %c0_19 = arith.constant 0 : index
    %c0_20 = arith.constant 0 : index
    %c0_21 = arith.constant 0 : index
    %63 = vector.load %arg8[%c0_19, %c0_20, %c0_21] : memref<1x1x128xf32, #tpu.memory_space<vmem>>, vector<1x1x128xf32>
    %64 = vector.shape_cast %63 : vector<1x1x128xf32> to vector<1x128xf32>
    %65 = vector.broadcast %64 : vector<1x128xf32> to vector<16x128xf32>
    %66 = arith.addf %62, %65 : vector<16x128xf32>
    %67 = arith.addf %66, %3 : vector<16x128xf32>
    %c0_22 = arith.constant 0 : index
    %c0_23 = arith.constant 0 : index
    %c0_24 = arith.constant 0 : index
    %68 = vector.load %arg9[%c0_22, %c0_23, %c0_24] : memref<1x1x128xf32, #tpu.memory_space<vmem>>, vector<1x1x128xf32>
    %69 = vector.shape_cast %68 : vector<1x1x128xf32> to vector<1x128xf32>
    %c0_25 = arith.constant 0 : index
    %c0_26 = arith.constant 0 : index
    %c0_27 = arith.constant 0 : index
    %70 = vector.load %arg10[%c0_25, %c0_26, %c0_27] : memref<1x1x128xf32, #tpu.memory_space<vmem>>, vector<1x1x128xf32>
    %71 = vector.shape_cast %70 : vector<1x1x128xf32> to vector<1x128xf32>
    %cst_28 = arith.constant dense<0.000000e+00> : vector<16xf32>
    %72 = vector.multi_reduction <add>, %67, %cst_28 [1] : vector<16x128xf32> to vector<16xf32>
    %73 = vector.shape_cast %72 : vector<16xf32> to vector<16x1xf32>
    %cst_29 = arith.constant 1.280000e+02 : f32
    %74 = vector.broadcast %cst_29 : f32 to vector<16x1xf32>
    %75 = arith.divf %73, %74 : vector<16x1xf32>
    %76 = vector.broadcast %75 : vector<16x1xf32> to vector<16x128xf32>
    %77 = arith.subf %67, %76 : vector<16x128xf32>
    %78 = arith.mulf %77, %77 : vector<16x128xf32>
    %cst_30 = arith.constant dense<0.000000e+00> : vector<16xf32>
    %79 = vector.multi_reduction <add>, %78, %cst_30 [1] : vector<16x128xf32> to vector<16xf32>
    %80 = vector.shape_cast %79 : vector<16xf32> to vector<16x1xf32>
    %cst_31 = arith.constant 1.280000e+02 : f32
    %81 = vector.broadcast %cst_31 : f32 to vector<16x1xf32>
    %82 = arith.divf %80, %81 : vector<16x1xf32>
    %83 = vector.broadcast %75 : vector<16x1xf32> to vector<16x128xf32>
    %84 = arith.subf %67, %83 : vector<16x128xf32>
    %cst_32 = arith.constant 9.99999974E-6 : f32
    %85 = vector.broadcast %cst_32 : f32 to vector<16x1xf32>
    %86 = arith.addf %82, %85 : vector<16x1xf32>
    %87 = math.rsqrt %86 : vector<16x1xf32>
    %88 = vector.broadcast %87 : vector<16x1xf32> to vector<16x128xf32>
    %89 = arith.mulf %84, %88 : vector<16x128xf32>
    %90 = vector.broadcast %69 : vector<1x128xf32> to vector<16x128xf32>
    %91 = arith.mulf %89, %90 : vector<16x128xf32>
    %92 = vector.broadcast %71 : vector<1x128xf32> to vector<16x128xf32>
    %93 = arith.addf %91, %92 : vector<16x128xf32>
    %94 = arith.truncf %93 : vector<16x128xf32> to vector<16x128xbf16>
    %c0_33 = arith.constant 0 : index
    %c0_34 = arith.constant 0 : index
    %c0_35 = arith.constant 0 : index
    %95 = vector.load %arg11[%c0_33, %c0_34, %c0_35] : memref<1x128x256xbf16, #tpu.memory_space<vmem>>, vector<1x128x256xbf16>
    %96 = vector.shape_cast %95 : vector<1x128x256xbf16> to vector<128x256xbf16>
    %cst_36 = arith.constant dense<0.000000e+00> : vector<16x256xf32>
    %97 = tpu.matmul %94, %96, %cst_36 {dimension_numbers = #tpu.dot_dimension_numbers<[1], [0], [0], [1], [0, 0, 1, 1], [], []>} : vector<16x128xbf16>, vector<128x256xbf16>, vector<16x256xf32> -> vector<16x256xf32>
    %c0_37 = arith.constant 0 : index
    %c0_38 = arith.constant 0 : index
    %c0_39 = arith.constant 0 : index
    %98 = vector.load %arg12[%c0_37, %c0_38, %c0_39] : memref<1x1x256xf32, #tpu.memory_space<vmem>>, vector<1x1x256xf32>
    %99 = vector.shape_cast %98 : vector<1x1x256xf32> to vector<1x256xf32>
    %100 = vector.broadcast %99 : vector<1x256xf32> to vector<16x256xf32>
    %101 = arith.addf %97, %100 : vector<16x256xf32>
    %102 = arith.mulf %101, %101 : vector<16x256xf32>
    %103 = arith.mulf %101, %102 : vector<16x256xf32>
    %cst_40 = arith.constant 4.471500e-02 : f32
    %104 = vector.broadcast %cst_40 : f32 to vector<16x256xf32>
    %105 = arith.mulf %104, %103 : vector<16x256xf32>
    %106 = arith.addf %101, %105 : vector<16x256xf32>
    %cst_41 = arith.constant 0.797884583 : f32
    %107 = vector.broadcast %cst_41 : f32 to vector<16x256xf32>
    %108 = arith.mulf %107, %106 : vector<16x256xf32>
    %109 = math.tanh %108 : vector<16x256xf32>
    %cst_42 = arith.constant 1.000000e+00 : f32
    %110 = vector.broadcast %cst_42 : f32 to vector<16x256xf32>
    %111 = arith.addf %110, %109 : vector<16x256xf32>
    %cst_43 = arith.constant 5.000000e-01 : f32
    %112 = vector.broadcast %cst_43 : f32 to vector<16x256xf32>
    %113 = arith.mulf %112, %111 : vector<16x256xf32>
    %114 = arith.mulf %101, %113 : vector<16x256xf32>
    %115 = arith.truncf %114 : vector<16x256xf32> to vector<16x256xbf16>
    %c0_44 = arith.constant 0 : index
    %c0_45 = arith.constant 0 : index
    %c0_46 = arith.constant 0 : index
    %116 = vector.load %arg13[%c0_44, %c0_45, %c0_46] : memref<1x256x128xbf16, #tpu.memory_space<vmem>>, vector<1x256x128xbf16>
    %117 = vector.shape_cast %116 : vector<1x256x128xbf16> to vector<256x128xbf16>
    %cst_47 = arith.constant dense<0.000000e+00> : vector<16x128xf32>
    %118 = tpu.matmul %115, %117, %cst_47 {dimension_numbers = #tpu.dot_dimension_numbers<[1], [0], [0], [1], [0, 0, 1, 1], [], []>} : vector<16x256xbf16>, vector<256x128xbf16>, vector<16x128xf32> -> vector<16x128xf32>
    %c0_48 = arith.constant 0 : index
    %c0_49 = arith.constant 0 : index
    %c0_50 = arith.constant 0 : index
    %119 = vector.load %arg14[%c0_48, %c0_49, %c0_50] : memref<1x1x128xf32, #tpu.memory_space<vmem>>, vector<1x1x128xf32>
    %120 = vector.shape_cast %119 : vector<1x1x128xf32> to vector<1x128xf32>
    %121 = vector.broadcast %120 : vector<1x128xf32> to vector<16x128xf32>
    %122 = arith.addf %118, %121 : vector<16x128xf32>
    %123 = arith.addf %122, %93 : vector<16x128xf32>
    %c0_51 = arith.constant 0 : index
    %c0_52 = arith.constant 0 : index
    %c0_53 = arith.constant 0 : index
    %124 = vector.load %arg15[%c0_51, %c0_52, %c0_53] : memref<1x1x128xf32, #tpu.memory_space<vmem>>, vector<1x1x128xf32>
    %125 = vector.shape_cast %124 : vector<1x1x128xf32> to vector<1x128xf32>
    %c0_54 = arith.constant 0 : index
    %c0_55 = arith.constant 0 : index
    %c0_56 = arith.constant 0 : index
    %126 = vector.load %arg16[%c0_54, %c0_55, %c0_56] : memref<1x1x128xf32, #tpu.memory_space<vmem>>, vector<1x1x128xf32>
    %127 = vector.shape_cast %126 : vector<1x1x128xf32> to vector<1x128xf32>
    %cst_57 = arith.constant dense<0.000000e+00> : vector<16xf32>
    %128 = vector.multi_reduction <add>, %123, %cst_57 [1] : vector<16x128xf32> to vector<16xf32>
    %129 = vector.shape_cast %128 : vector<16xf32> to vector<16x1xf32>
    %cst_58 = arith.constant 1.280000e+02 : f32
    %130 = vector.broadcast %cst_58 : f32 to vector<16x1xf32>
    %131 = arith.divf %129, %130 : vector<16x1xf32>
    %132 = vector.broadcast %131 : vector<16x1xf32> to vector<16x128xf32>
    %133 = arith.subf %123, %132 : vector<16x128xf32>
    %134 = arith.mulf %133, %133 : vector<16x128xf32>
    %cst_59 = arith.constant dense<0.000000e+00> : vector<16xf32>
    %135 = vector.multi_reduction <add>, %134, %cst_59 [1] : vector<16x128xf32> to vector<16xf32>
    %136 = vector.shape_cast %135 : vector<16xf32> to vector<16x1xf32>
    %cst_60 = arith.constant 1.280000e+02 : f32
    %137 = vector.broadcast %cst_60 : f32 to vector<16x1xf32>
    %138 = arith.divf %136, %137 : vector<16x1xf32>
    %139 = vector.broadcast %131 : vector<16x1xf32> to vector<16x128xf32>
    %140 = arith.subf %123, %139 : vector<16x128xf32>
    %cst_61 = arith.constant 9.99999974E-6 : f32
    %141 = vector.broadcast %cst_61 : f32 to vector<16x1xf32>
    %142 = arith.addf %138, %141 : vector<16x1xf32>
    %143 = math.rsqrt %142 : vector<16x1xf32>
    %144 = vector.broadcast %143 : vector<16x1xf32> to vector<16x128xf32>
    %145 = arith.mulf %140, %144 : vector<16x128xf32>
    %146 = vector.broadcast %125 : vector<1x128xf32> to vector<16x128xf32>
    %147 = arith.mulf %145, %146 : vector<16x128xf32>
    %148 = vector.broadcast %127 : vector<1x128xf32> to vector<16x128xf32>
    %149 = arith.addf %147, %148 : vector<16x128xf32>
    %c0_62 = arith.constant 0 : index
    %c0_63 = arith.constant 0 : index
    %150 = vector.load %arg20[%c0_62, %c0_63] : memref<16x128xf32, #tpu.memory_space<vmem>>, vector<16x128xf32>
    tpu.vector_store %arg20[%c0_62, %c0_63], %149 {strides = array<i32>} : memref<16x128xf32, #tpu.memory_space<vmem>>, vector<16x128xf32>,
    %c1_i32 = arith.constant 1 : i32
    %151 = arith.cmpi eq, %arg0, %c1_i32 : i32
    %152 = arith.extui %151 : i1 to i32
    %c0_i32_64 = arith.constant 0 : i32
    %153 = arith.cmpi ne, %152, %c0_i32_64 : i32
    scf.if %153 {
      %154 = vector.extract_strided_slice %149 {offsets = [0, 0], sizes = [1, 128], strides = [1, 1]} : vector<16x128xf32> to vector<1x128xf32>
      %155 = vector.extract_strided_slice %149 {offsets = [8, 0], sizes = [1, 128], strides = [1, 1]} : vector<16x128xf32> to vector<1x128xf32>
      %156 = tpu.concatenate %154, %155 in 0 : vector<1x128xf32>, vector<1x128xf32> -> vector<2x128xf32>
      %157 = arith.truncf %156 : vector<2x128xf32> to vector<2x128xbf16>
      %c0_65 = arith.constant 0 : index
      %c0_66 = arith.constant 0 : index
      %158 = vector.load %arg17[%c0_65, %c0_66] : memref<128x128xbf16, #tpu.memory_space<vmem>>, vector<128x128xbf16>
      %cst_67 = arith.constant dense<0.000000e+00> : vector<2x128xf32>
      %159 = tpu.matmul %157, %158, %cst_67 {dimension_numbers = #tpu.dot_dimension_numbers<[1], [0], [0], [1], [0, 0, 1, 1], [], []>} : vector<2x128xbf16>, vector<128x128xbf16>, vector<2x128xf32> -> vector<2x128xf32>
      %c0_68 = arith.constant 0 : index
      %c0_69 = arith.constant 0 : index
      %160 = vector.load %arg18[%c0_68, %c0_69] : memref<1x128xf32, #tpu.memory_space<vmem>>, vector<1x128xf32>
      %161 = vector.broadcast %160 : vector<1x128xf32> to vector<2x128xf32>
      %162 = arith.addf %159, %161 : vector<2x128xf32>
      %c0_70 = arith.constant 0 : index
      %c0_71 = arith.constant 0 : index
      %163 = vector.load %arg21[%c0_70, %c0_71] : memref<2x128xf32, #tpu.memory_space<vmem>>, vector<2x128xf32>
      tpu.vector_store %arg21[%c0_70, %c0_71], %162 {strides = array<i32>} : memref<2x128xf32, #tpu.memory_space<vmem>>, vector<2x128xf32>,
      %164 = tpu.iota {dimensions = array<i32: 1>} : vector<2x128xi32>
      %c5_i32 = arith.constant 5 : i32
      %165 = vector.broadcast %c5_i32 : i32 to vector<2x128xi32>
      %166 = arith.cmpi slt, %164, %165 : vector<2x128xi32>
      %cst_72 = arith.constant -1.000000e+30 : f32
      %167 = vector.broadcast %cst_72 : f32 to vector<2x128xf32>
      %168 = arith.select %166, %162, %167 : vector<2x128xi1>, vector<2x128xf32>
      %cst_73 = arith.constant dense<0xFF800000> : vector<2xf32>
      %169 = vector.multi_reduction <maximumf>, %168, %cst_73 [1] : vector<2x128xf32> to vector<2xf32>
      %170 = vector.shape_cast %169 : vector<2xf32> to vector<2x1xf32>
      %171 = vector.broadcast %170 : vector<2x1xf32> to vector<2x128xf32>
      %172 = arith.subf %168, %171 : vector<2x128xf32>
      %173 = math.exp %172 : vector<2x128xf32>
      %cst_74 = arith.constant dense<0.000000e+00> : vector<2xf32>
      %174 = vector.multi_reduction <add>, %173, %cst_74 [1] : vector<2x128xf32> to vector<2xf32>
      %175 = vector.shape_cast %174 : vector<2xf32> to vector<2x1xf32>
      %176 = math.log %175 : vector<2x1xf32>
      %177 = vector.broadcast %176 : vector<2x1xf32> to vector<2x128xf32>
      %178 = arith.subf %172, %177 : vector<2x128xf32>
      %c0_75 = arith.constant 0 : index
      %c0_76 = arith.constant 0 : index
      %179 = vector.load %arg19[%c0_75, %c0_76] : memref<2x1xi32, #tpu.memory_space<vmem>>, vector<2x1xi32>
      %180 = vector.broadcast %179 : vector<2x1xi32> to vector<2x128xi32>
      %181 = arith.cmpi eq, %164, %180 : vector<2x128xi32>
      %182 = arith.extui %181 : vector<2x128xi1> to vector<2x128xi32>
      %183 = arith.sitofp %182 : vector<2x128xi32> to vector<2x128xf32>
      %184 = arith.mulf %183, %178 : vector<2x128xf32>
      %cst_77 = arith.constant dense<0.000000e+00> : vector<2xf32>
      %185 = vector.multi_reduction <add>, %184, %cst_77 [1] : vector<2x128xf32> to vector<2xf32>
      %186 = vector.shape_cast %185 : vector<2xf32> to vector<2x1xf32>
      %cst_78 = arith.constant 0.000000e+00 : f32
      %187 = vector.broadcast %cst_78 : f32 to vector<2x1xf32>
      %188 = arith.subf %187, %186 : vector<2x1xf32>
      %cst_79 = arith.constant dense<0.000000e+00> : vector<1xf32>
      %189 = vector.multi_reduction <add>, %188, %cst_79 [0] : vector<2x1xf32> to vector<1xf32>
      %190 = vector.shape_cast %189 : vector<1xf32> to vector<1x1xf32>
      %cst_80 = arith.constant 2.000000e+00 : f32
      %191 = vector.broadcast %cst_80 : f32 to vector<1x1xf32>
      %192 = arith.divf %190, %191 : vector<1x1xf32>
      %c0_81 = arith.constant 0 : index
      %c0_82 = arith.constant 0 : index
      %193 = vector.load %arg22[%c0_81, %c0_82] : memref<1x1xf32, #tpu.memory_space<vmem>>, vector<1x1xf32>
      tpu.vector_store %arg22[%c0_81, %c0_82], %192 {strides = array<i32>} : memref<1x1xf32, #tpu.memory_space<vmem>>, vector<1x1xf32>,
    } else {
    }
    return
  }
  func.func @transform_0(%arg0: i32) -> (i32, i32) {
    %c0_i32 = arith.constant 0 : i32
    %c0_i32_0 = arith.constant 0 : i32
    %c0_i32_1 = arith.constant 0 : i32
    return %c0_i32, %c0_i32_0 : i32, i32
  }
  func.func @transform_1(%arg0: i32) -> (i32, i32) {
    %c0_i32 = arith.constant 0 : i32
    %c0_i32_0 = arith.constant 0 : i32
    %c0_i32_1 = arith.constant 0 : i32
    return %c0_i32, %c0_i32_0 : i32, i32
  }
  func.func @transform_2(%arg0: i32) -> (i32, i32) {
    %c0_i32 = arith.constant 0 : i32
    %c0_i32_0 = arith.constant 0 : i32
    %c0_i32_1 = arith.constant 0 : i32
    return %c0_i32, %c0_i32_0 : i32, i32
  }
  func.func @transform_3(%arg0: i32) -> (i32, i32) {
    %c0_i32 = arith.constant 0 : i32
    %c0_i32_0 = arith.constant 0 : i32
    %c0_i32_1 = arith.constant 0 : i32
    return %c0_i32, %c0_i32_0 : i32, i32
  }
  func.func @transform_4(%arg0: i32) -> (i32, i32, i32) {
    %c0_i32 = arith.constant 0 : i32
    %c0_i32_0 = arith.constant 0 : i32
    %c0_i32_1 = arith.constant 0 : i32
    return %arg0, %c0_i32, %c0_i32_0 : i32, i32, i32
  }
  func.func @transform_5(%arg0: i32) -> (i32, i32, i32) {
    %c0_i32 = arith.constant 0 : i32
    %c0_i32_0 = arith.constant 0 : i32
    %c0_i32_1 = arith.constant 0 : i32
    return %arg0, %c0_i32, %c0_i32_0 : i32, i32, i32
  }
  func.func @transform_6(%arg0: i32) -> (i32, i32, i32) {
    %c0_i32 = arith.constant 0 : i32
    %c0_i32_0 = arith.constant 0 : i32
    %c0_i32_1 = arith.constant 0 : i32
    return %arg0, %c0_i32, %c0_i32_0 : i32, i32, i32
  }
  func.func @transform_7(%arg0: i32) -> (i32, i32, i32) {
    %c0_i32 = arith.constant 0 : i32
    %c0_i32_0 = arith.constant 0 : i32
    %c0_i32_1 = arith.constant 0 : i32
    return %arg0, %c0_i32, %c0_i32_0 : i32, i32, i32
  }
  func.func @transform_8(%arg0: i32) -> (i32, i32, i32) {
    %c0_i32 = arith.constant 0 : i32
    %c0_i32_0 = arith.constant 0 : i32
    %c0_i32_1 = arith.constant 0 : i32
    return %arg0, %c0_i32, %c0_i32_0 : i32, i32, i32
  }
  func.func @transform_9(%arg0: i32) -> (i32, i32, i32) {
    %c0_i32 = arith.constant 0 : i32
    %c0_i32_0 = arith.constant 0 : i32
    %c0_i32_1 = arith.constant 0 : i32
    return %arg0, %c0_i32, %c0_i32_0 : i32, i32, i32
  }
  func.func @transform_10(%arg0: i32) -> (i32, i32, i32) {
    %c0_i32 = arith.constant 0 : i32
    %c0_i32_0 = arith.constant 0 : i32
    %c0_i32_1 = arith.constant 0 : i32
    return %arg0, %c0_i32, %c0_i32_0 : i32, i32, i32
  }
  func.func @transform_11(%arg0: i32) -> (i32, i32, i32) {
    %c0_i32 = arith.constant 0 : i32
    %c0_i32_0 = arith.constant 0 : i32
    %c0_i32_1 = arith.constant 0 : i32
    return %arg0, %c0_i32, %c0_i32_0 : i32, i32, i32
  }
  func.func @transform_12(%arg0: i32) -> (i32, i32, i32) {
    %c0_i32 = arith.constant 0 : i32
    %c0_i32_0 = arith.constant 0 : i32
    %c0_i32_1 = arith.constant 0 : i32
    return %arg0, %c0_i32, %c0_i32_0 : i32, i32, i32
  }
  func.func @transform_13(%arg0: i32) -> (i32, i32, i32) {
    %c0_i32 = arith.constant 0 : i32
    %c0_i32_0 = arith.constant 0 : i32
    %c0_i32_1 = arith.constant 0 : i32
    return %arg0, %c0_i32, %c0_i32_0 : i32, i32, i32
  }
  func.func @transform_14(%arg0: i32) -> (i32, i32, i32) {
    %c0_i32 = arith.constant 0 : i32
    %c0_i32_0 = arith.constant 0 : i32
    %c0_i32_1 = arith.constant 0 : i32
    return %arg0, %c0_i32, %c0_i32_0 : i32, i32, i32
  }
  func.func @transform_15(%arg0: i32) -> (i32, i32, i32) {
    %c0_i32 = arith.constant 0 : i32
    %c0_i32_0 = arith.constant 0 : i32
    %c0_i32_1 = arith.constant 0 : i32
    return %arg0, %c0_i32, %c0_i32_0 : i32, i32, i32
  }
  func.func @transform_16(%arg0: i32) -> (i32, i32) {
    %c0_i32 = arith.constant 0 : i32
    %c0_i32_0 = arith.constant 0 : i32
    %c0_i32_1 = arith.constant 0 : i32
    return %c0_i32, %c0_i32_0 : i32, i32
  }
  func.func @transform_17(%arg0: i32) -> (i32, i32) {
    %c0_i32 = arith.constant 0 : i32
    %c0_i32_0 = arith.constant 0 : i32
    %c0_i32_1 = arith.constant 0 : i32
    return %c0_i32, %c0_i32_0 : i32, i32
  }
  func.func @transform_18(%arg0: i32) -> (i32, i32) {
    %c0_i32 = arith.constant 0 : i32
    %c0_i32_0 = arith.constant 0 : i32
    %c0_i32_1 = arith.constant 0 : i32
    return %c0_i32, %c0_i32_0 : i32, i32
  }
  func.func @transform_19(%arg0: i32) -> (i32, i32) {
    %c0_i32 = arith.constant 0 : i32
    %c0_i32_0 = arith.constant 0 : i32
    %c0_i32_1 = arith.constant 0 : i32
    return %c0_i32, %c0_i32_0 : i32, i32
  }
  func.func @transform_20(%arg0: i32) -> (i32, i32) {
    %c0_i32 = arith.constant 0 : i32
    %c0_i32_0 = arith.constant 0 : i32
    %c0_i32_1 = arith.constant 0 : i32
    return %c0_i32, %c0_i32_0 : i32, i32
  }
  func.func @transform_21(%arg0: i32) -> (i32, i32) {
    %c0_i32 = arith.constant 0 : i32
    %c0_i32_0 = arith.constant 0 : i32
    %c0_i32_1 = arith.constant 0 : i32
    return %c0_i32, %c0_i32_0 : i32, i32
  }
}

</mosaic_0001>

<llo_original>
// kernel: custom_model_forward.1
$region0: #{custom_model_forward.1}
  #allocation0 [shape = 'u32[]', space=smem, size = 0x4, offset = 0x4, fixed_abs, tag = 'smem constant byte address 0x4 - core index']
  #allocation1 [shape = 'u32[144,128]{1,0:T(1,128)}', space=vmem, size = 0x12000, scoped, tag = 'internal scratch']
  %s0 = inlined_call_operand.vmem [shape: f32[16,128], index: 0, kind: input, shape index: {}]
  %s1 = inlined_call_operand.vmem [shape: f32[2,8], index: 1, kind: input, shape index: {}]
  %s2 = inlined_call_operand.vmem [shape: f32[1,128], index: 2, kind: input, shape index: {}]
  %s3 = inlined_call_operand.vmem [shape: f32[1,128], index: 3, kind: input, shape index: {}]
  %s4 = inlined_call_operand.vmem [shape: bf16[2,128,384], index: 4, kind: input, shape index: {}]
  %s5 = inlined_call_operand.vmem [shape: f32[2,1,384], index: 5, kind: input, shape index: {}]
  %s6 = inlined_call_operand.hbm [shape: bf16[2,128,128], index: 6, kind: input, shape index: {}]
  %s7 = inlined_call_operand.vmem [shape: f32[2,1,128], index: 7, kind: input, shape index: {}]
  %s8 = inlined_call_operand.vmem [shape: f32[2,1,128], index: 8, kind: input, shape index: {}]
  %s9 = inlined_call_operand.vmem [shape: f32[2,1,128], index: 9, kind: input, shape index: {}]
  %s10 = inlined_call_operand.hbm [shape: bf16[2,128,256], index: 10, kind: input, shape index: {}]
  %s11 = inlined_call_operand.vmem [shape: f32[2,1,256], index: 11, kind: input, shape index: {}]
  %s12 = inlined_call_operand.hbm [shape: bf16[2,256,128], index: 12, kind: input, shape index: {}]
  %s13 = inlined_call_operand.vmem [shape: f32[2,1,128], index: 13, kind: input, shape index: {}]
  %s14 = inlined_call_operand.vmem [shape: f32[2,1,128], index: 14, kind: input, shape index: {}]
  %s15 = inlined_call_operand.vmem [shape: f32[2,1,128], index: 15, kind: input, shape index: {}]
  %s16 = inlined_call_operand.hbm [shape: bf16[128,128], index: 16, kind: input, shape index: {}]
  %s17 = inlined_call_operand.vmem [shape: f32[1,128], index: 17, kind: input, shape index: {}]
  %s18 = inlined_call_operand.vmem [shape: s32[2,1], index: 18, kind: input, shape index: {}]
  %s19 = inlined_call_operand.hbm [shape: f32[16,128], index: 19, kind: output, shape index: {0}]
  %s20 = inlined_call_operand.hbm [shape: f32[2,128], index: 20, kind: output, shape index: {1}]
  %s21 = inlined_call_operand.hbm [shape: f32[1,1], index: 21, kind: output, shape index: {2}]
  %22 = xla_tuple %s19, %s20, %s21
  %s23 = sld [smem:[#allocation0]]
  $region149: #{custom_model_forward.1} parent=0
    _
  %s25 = ssub.s32 1, %s23
  %s26 = scalar_select 0, %s25, %s23
  $region1: #{custom_model_forward.1} parent=0
    #allocation2 [shape = 'u8[65536]{0}', space=vmem, size = 0x10000, scoped, tag = 'input window, operand 6']
    #allocation3 [shape = 's32[2]{0}', space=sflag, size = 0x8, scoped, tag = 'scoped memory for custom_model_forward.1']
    #allocation4 [shape = 's32[2]{0}', space=sflag, size = 0x8, scoped, tag = 'scoped memory for custom_model_forward.1']
    #allocation5 [shape = 'u8[131072]{0}', space=vmem, size = 0x20000, scoped, tag = 'input window, operand 10']
    #allocation6 [shape = 's32[2]{0}', space=sflag, size = 0x8, scoped, tag = 'scoped memory for custom_model_forward.1']
    #allocation7 [shape = 'u8[131072]{0}', space=vmem, size = 0x20000, scoped, tag = 'input window, operand 12']
    #allocation8 [shape = 'u8[32768]{0}', space=vmem, size = 0x8000, scoped, tag = 'input window, operand 16, single buffered']
    #allocation9 [shape = 's32[1]{0}', space=sflag, size = 0x4, scoped, tag = 'scoped memory for custom_model_forward.1']
    #allocation10 [shape = 'u8[8192]{0}', space=vmem, size = 0x2000, scoped, tag = 'output window, operand 0, single buffered']
    #allocation11 [shape = 'u8[1024]{0}', space=vmem, size = 0x400, scoped, tag = 'output window, operand 1, single buffered']
    #allocation12 [shape = 's32[1]{0}', space=sflag, size = 0x4, scoped, tag = 'scoped memory for custom_model_forward.1']
    #allocation13 [shape = 'u8[512]{0}', space=vmem, size = 0x400, scoped, tag = 'output window, operand 2, single buffered']
    %27 = vsyncpa [#allocation3], 0
    %s28 = scalar_lea.sflag [#allocation3], 1
    %29 = vsyncpa %s28, 0
    %30 = vsyncpa [#allocation6], 0
    %s31 = scalar_lea.sflag [#allocation6], 1
    %32 = vsyncpa %s31, 0
    %33 = vsyncpa [#allocation9], 0
    %34 = vsyncpa [#allocation4], 0
    %35 = vsyncpa [#allocation12], 0
    loop: start=0, step=1, limit=4
    $region2: #{custom_model_forward.1} parent=1 // loop_pre_header
      _
    $region3: #{custom_model_forward.1} parent=1 // loop_header
      %s37 = sphi 0, %s41
      %p38 = scmp.ge.s32.totalorder %s37, 4
      %s45 = sphi 0, %s45
      %s47 = sphi 0, %s45
      %s48 = sphi 0, %s47
      %s62 = sphi 0, %s48
      %s66 = sphi 0, %s66
      %s68 = sphi 0, %s66
      %s69 = sphi 0, %s68
      %s83 = sphi 0, %s69
      %s87 = sphi 0, %s87
      %s89 = sphi 0, %s87
      %s90 = sphi 0, %s89
      %s104 = sphi 0, %s90
      %s108 = sphi 0, %s108
      %s110 = sphi 0, %s108
      %s111 = sphi 0, %s110
      %s125 = sphi 0, %s111
      %s131 = sphi 0, %s133
      %s134 = sphi 0, %s131
      %s135 = sphi 0, %s134
      %s151 = sphi 0, %s135
      %s157 = sphi 0, %s159
      %s160 = sphi 0, %s157
      %s161 = sphi 0, %s160
      %s177 = sphi 0, %s161
      %s183 = sphi 0, %s185
      %s186 = sphi 0, %s183
      %s187 = sphi 0, %s186
      %s203 = sphi 0, %s187
      %s209 = sphi 0, %s211
      %s212 = sphi 0, %s209
      %s213 = sphi 0, %s212
      %s229 = sphi 0, %s213
      %s235 = sphi 0, %s237
      %s238 = sphi 0, %s235
      %s239 = sphi 0, %s238
      %s255 = sphi 0, %s239
      %s261 = sphi 0, %s263
      %s264 = sphi 0, %s261
      %s265 = sphi 0, %s264
      %s281 = sphi 0, %s265
      %s287 = sphi 0, %s289
      %s290 = sphi 0, %s287
      %s291 = sphi 0, %s290
      %s307 = sphi 0, %s291
      %s313 = sphi 0, %s315
      %s316 = sphi 0, %s313
      %s317 = sphi 0, %s316
      %s333 = sphi 0, %s317
      %s339 = sphi 0, %s341
      %s342 = sphi 0, %s339
      %s343 = sphi 0, %s342
      %s359 = sphi 0, %s343
      %s365 = sphi 0, %s367
      %s368 = sphi 0, %s365
      %s369 = sphi 0, %s368
      %s385 = sphi 0, %s369
      %s391 = sphi 0, %s393
      %s394 = sphi 0, %s391
      %s395 = sphi 0, %s394
      %s411 = sphi 0, %s395
      %s417 = sphi 0, %s419
      %s420 = sphi 0, %s417
      %s421 = sphi 0, %s420
      %s437 = sphi 0, %s421
      %s441 = sphi 0, %s441
      %s443 = sphi 0, %s441
      %s444 = sphi 0, %s443
      %s458 = sphi 0, %s444
      %s462 = sphi 0, %s462
      %s464 = sphi 0, %s462
      %s465 = sphi 0, %s464
      %s479 = sphi 0, %s465
      %s483 = sphi 0, %s483
      %s485 = sphi 0, %s483
      %s486 = sphi 0, %s485
      %s500 = sphi 0, %s486
      %s504 = sphi 0, %s504
      %s506 = sphi 0, %s504
      %s507 = sphi 0, %s506
      %s521 = sphi 0, %s507
      %s525 = sphi 0, %s525
      %s527 = sphi 0, %s525
      %s528 = sphi 0, %s527
      %s542 = sphi 0, %s528
      %s546 = sphi 0, %s546
      %s548 = sphi 0, %s546
      %s549 = sphi 0, %s548
      %s563 = sphi 0, %s549
    $region4: #{custom_model_forward.1} parent=1 // loop_header_branch
      %40 = sbr.rel (%p38) target = $region8
    $region5: #{custom_model_forward.1} parent=1 // loop_body
      %s42 = ssub.s32 %s37, 1
      %s43 = ssub.s32 %s37, 2
      %s44 = sadd.s32 %s37, 1
      %s46 = sadd.s32 %s45, 1
      %p49 = scmp.eq.s32.totalorder %s37, 1
      %p50 = scmp.ne.s32.totalorder %s45, %s47
      %p51 = scmp.eq.s32.totalorder %s37, 0
      %p52 = por %p50, %p51
      %p53 = scmp.ne.s32.totalorder %s45, %s47
      %p54 = scmp.eq.s32.totalorder %s42, 1
      %p55 = por %p53, %p54
      %p56 = scmp.ne.s32.totalorder %s47, %s48
      %p57 = scmp.eq.s32.totalorder %s42, 0
      %p58 = por %p56, %p57
      %p59 = scmp.ne.s32.totalorder %s47, %s48
      %p60 = scmp.eq.s32.totalorder %s43, 1
      %p61 = por %p59, %p60
      %p63 = scmp.ne.s32.totalorder %s48, %s62
      %p64 = scmp.eq.s32.totalorder %s43, 0
      %p65 = por %p63, %p64
      %s67 = sadd.s32 %s66, 1
      %p70 = scmp.eq.s32.totalorder %s37, 1
      %p71 = scmp.ne.s32.totalorder %s66, %s68
      %p72 = scmp.eq.s32.totalorder %s37, 0
      %p73 = por %p71, %p72
      %p74 = scmp.ne.s32.totalorder %s66, %s68
      %p75 = scmp.eq.s32.totalorder %s42, 1
      %p76 = por %p74, %p75
      %p77 = scmp.ne.s32.totalorder %s68, %s69
      %p78 = scmp.eq.s32.totalorder %s42, 0
      %p79 = por %p77, %p78
      %p80 = scmp.ne.s32.totalorder %s68, %s69
      %p81 = scmp.eq.s32.totalorder %s43, 1
      %p82 = por %p80, %p81
      %p84 = scmp.ne.s32.totalorder %s69, %s83
      %p85 = scmp.eq.s32.totalorder %s43, 0
      %p86 = por %p84, %p85
      %s88 = sadd.s32 %s87, 1
      %p91 = scmp.eq.s32.totalorder %s37, 1
      %p92 = scmp.ne.s32.totalorder %s87, %s89
      %p93 = scmp.eq.s32.totalorder %s37, 0
      %p94 = por %p92, %p93
      %p95 = scmp.ne.s32.totalorder %s87, %s89
      %p96 = scmp.eq.s32.totalorder %s42, 1
      %p97 = por %p95, %p96
      %p98 = scmp.ne.s32.totalorder %s89, %s90
      %p99 = scmp.eq.s32.totalorder %s42, 0
      %p100 = por %p98, %p99
      %p101 = scmp.ne.s32.totalorder %s89, %s90
      %p102 = scmp.eq.s32.totalorder %s43, 1
      %p103 = por %p101, %p102
      %p105 = scmp.ne.s32.totalorder %s90, %s104
      %p106 = scmp.eq.s32.totalorder %s43, 0
      %p107 = por %p105, %p106
      %s109 = sadd.s32 %s108, 1
      %p112 = scmp.eq.s32.totalorder %s37, 1
      %p113 = scmp.ne.s32.totalorder %s108, %s110
      %p114 = scmp.eq.s32.totalorder %s37, 0
      %p115 = por %p113, %p114
      %p116 = scmp.ne.s32.totalorder %s108, %s110
      %p117 = scmp.eq.s32.totalorder %s42, 1
      %p118 = por %p116, %p117
      %p119 = scmp.ne.s32.totalorder %s110, %s111
      %p120 = scmp.eq.s32.totalorder %s42, 0
      %p121 = por %p119, %p120
      %p122 = scmp.ne.s32.totalorder %s110, %s111
      %p123 = scmp.eq.s32.totalorder %s43, 1
      %p124 = por %p122, %p123
      %p126 = scmp.ne.s32.totalorder %s111, %s125
      %p127 = scmp.eq.s32.totalorder %s43, 0
      %p128 = por %p126, %p127
      %s129 = ssub.s32 %s37, %s44
      %p130 = scmp.eq.s32.totalorder %s129, 0
      %s132 = sadd.s32 %s131, 1
      %s133 = scalar_select %p130, %s131, %s132
      %p136 = pneg %p130
      %p137 = scmp.eq.s32.totalorder %s37, 1
      %p138 = por %p136, %p137
      %p139 = scmp.ne.s32.totalorder %s131, %s134
      %p140 = scmp.eq.s32.totalorder %s37, 0
      %p141 = por %p139, %p140
      %p142 = scmp.ne.s32.totalorder %s131, %s134
      %p143 = scmp.eq.s32.totalorder %s42, 1
      %p144 = por %p142, %p143
      %p145 = scmp.ne.s32.totalorder %s134, %s135
      %p146 = scmp.eq.s32.totalorder %s42, 0
      %p147 = por %p145, %p146
      %p148 = scmp.ne.s32.totalorder %s134, %s135
      %p149 = scmp.eq.s32.totalorder %s43, 1
      %p150 = por %p148, %p149
      %p152 = scmp.ne.s32.totalorder %s135, %s151
      %p153 = scmp.eq.s32.totalorder %s43, 0
      %p154 = por %p152, %p153
      %s155 = ssub.s32 %s37, %s44
      %p156 = scmp.eq.s32.totalorder %s155, 0
      %s158 = sadd.s32 %s157, 1
      %s159 = scalar_select %p156, %s157, %s158
      %p162 = pneg %p156
      %p163 = scmp.eq.s32.totalorder %s37, 1
      %p164 = por %p162, %p163
      %p165 = scmp.ne.s32.totalorder %s157, %s160
      %p166 = scmp.eq.s32.totalorder %s37, 0
      %p167 = por %p165, %p166
      %p168 = scmp.ne.s32.totalorder %s157, %s160
      %p169 = scmp.eq.s32.totalorder %s42, 1
      %p170 = por %p168, %p169
      %p171 = scmp.ne.s32.totalorder %s160, %s161
      %p172 = scmp.eq.s32.totalorder %s42, 0
      %p173 = por %p171, %p172
      %p174 = scmp.ne.s32.totalorder %s160, %s161
      %p175 = scmp.eq.s32.totalorder %s43, 1
      %p176 = por %p174, %p175
      %p178 = scmp.ne.s32.totalorder %s161, %s177
      %p179 = scmp.eq.s32.totalorder %s43, 0
      %p180 = por %p178, %p179
      %s181 = ssub.s32 %s37, %s44
      %p182 = scmp.eq.s32.totalorder %s181, 0
      %s184 = sadd.s32 %s183, 1
      %s185 = scalar_select %p182, %s183, %s184
      %p188 = pneg %p182
      %p189 = scmp.eq.s32.totalorder %s37, 1
      %p190 = por %p188, %p189
      %p191 = scmp.ne.s32.totalorder %s183, %s186
      %p192 = scmp.eq.s32.totalorder %s37, 0
      %p193 = por %p191, %p192
      %p194 = scmp.ne.s32.totalorder %s183, %s186
      %p195 = scmp.eq.s32.totalorder %s42, 1
      %p196 = por %p194, %p195
      %p197 = scmp.ne.s32.totalorder %s186, %s187
      %p198 = scmp.eq.s32.totalorder %s42, 0
      %p199 = por %p197, %p198
      %p200 = scmp.ne.s32.totalorder %s186, %s187
      %p201 = scmp.eq.s32.totalorder %s43, 1
      %p202 = por %p200, %p201
      %p204 = scmp.ne.s32.totalorder %s187, %s203
      %p205 = scmp.eq.s32.totalorder %s43, 0
      %p206 = por %p204, %p205
      %s207 = ssub.s32 %s37, %s44
      %p208 = scmp.eq.s32.totalorder %s207, 0
      %s210 = sadd.s32 %s209, 1
      %s211 = scalar_select %p208, %s209, %s210
      %p214 = pneg %p208
      %p215 = scmp.eq.s32.totalorder %s37, 1
      %p216 = por %p214, %p215
      %p217 = scmp.ne.s32.totalorder %s209, %s212
      %p218 = scmp.eq.s32.totalorder %s37, 0
      %p219 = por %p217, %p218
      %p220 = scmp.ne.s32.totalorder %s209, %s212
      %p221 = scmp.eq.s32.totalorder %s42, 1
      %p222 = por %p220, %p221
      %p223 = scmp.ne.s32.totalorder %s212, %s213
      %p224 = scmp.eq.s32.totalorder %s42, 0
      %p225 = por %p223, %p224
      %p226 = scmp.ne.s32.totalorder %s212, %s213
      %p227 = scmp.eq.s32.totalorder %s43, 1
      %p228 = por %p226, %p227
      %p230 = scmp.ne.s32.totalorder %s213, %s229
      %p231 = scmp.eq.s32.totalorder %s43, 0
      %p232 = por %p230, %p231
      %s233 = ssub.s32 %s37, %s44
      %p234 = scmp.eq.s32.totalorder %s233, 0
      %s236 = sadd.s32 %s235, 1
      %s237 = scalar_select %p234, %s235, %s236
      %p240 = pneg %p234
      %p241 = scmp.eq.s32.totalorder %s37, 1
      %p242 = por %p240, %p241
      %p243 = scmp.ne.s32.totalorder %s235, %s238
      %p244 = scmp.eq.s32.totalorder %s37, 0
      %p245 = por %p243, %p244
      %p246 = scmp.ne.s32.totalorder %s235, %s238
      %p247 = scmp.eq.s32.totalorder %s42, 1
      %p248 = por %p246, %p247
      %p249 = scmp.ne.s32.totalorder %s238, %s239
      %p250 = scmp.eq.s32.totalorder %s42, 0
      %p251 = por %p249, %p250
      %p252 = scmp.ne.s32.totalorder %s238, %s239
      %p253 = scmp.eq.s32.totalorder %s43, 1
      %p254 = por %p252, %p253
      %p256 = scmp.ne.s32.totalorder %s239, %s255
      %p257 = scmp.eq.s32.totalorder %s43, 0
      %p258 = por %p256, %p257
      %s259 = ssub.s32 %s37, %s44
      %p260 = scmp.eq.s32.totalorder %s259, 0
      %s262 = sadd.s32 %s261, 1
      %s263 = scalar_select %p260, %s261, %s262
      %p266 = pneg %p260
      %p267 = scmp.eq.s32.totalorder %s37, 1
      %p268 = por %p266, %p267
      %p269 = scmp.ne.s32.totalorder %s261, %s264
      %p270 = scmp.eq.s32.totalorder %s37, 0
      %p271 = por %p269, %p270
      %p272 = scmp.ne.s32.totalorder %s261, %s264
      %p273 = scmp.eq.s32.totalorder %s42, 1
      %p274 = por %p272, %p273
      %p275 = scmp.ne.s32.totalorder %s264, %s265
      %p276 = scmp.eq.s32.totalorder %s42, 0
      %p277 = por %p275, %p276
      %p278 = scmp.ne.s32.totalorder %s264, %s265
      %p279 = scmp.eq.s32.totalorder %s43, 1
      %p280 = por %p278, %p279
      %p282 = scmp.ne.s32.totalorder %s265, %s281
      %p283 = scmp.eq.s32.totalorder %s43, 0
      %p284 = por %p282, %p283
      %s285 = ssub.s32 %s37, %s44
      %p286 = scmp.eq.s32.totalorder %s285, 0
      %s288 = sadd.s32 %s287, 1
      %s289 = scalar_select %p286, %s287, %s288
      %p292 = pneg %p286
      %p293 = scmp.eq.s32.totalorder %s37, 1
      %p294 = por %p292, %p293
      %p295 = scmp.ne.s32.totalorder %s287, %s290
      %p296 = scmp.eq.s32.totalorder %s37, 0
      %p297 = por %p295, %p296
      %p298 = scmp.ne.s32.totalorder %s287, %s290
      %p299 = scmp.eq.s32.totalorder %s42, 1
      %p300 = por %p298, %p299
      %p301 = scmp.ne.s32.totalorder %s290, %s291
      %p302 = scmp.eq.s32.totalorder %s42, 0
      %p303 = por %p301, %p302
      %p304 = scmp.ne.s32.totalorder %s290, %s291
      %p305 = scmp.eq.s32.totalorder %s43, 1
      %p306 = por %p304, %p305
      %p308 = scmp.ne.s32.totalorder %s291, %s307
      %p309 = scmp.eq.s32.totalorder %s43, 0
      %p310 = por %p308, %p309
      %s311 = ssub.s32 %s37, %s44
      %p312 = scmp.eq.s32.totalorder %s311, 0
      %s314 = sadd.s32 %s313, 1
      %s315 = scalar_select %p312, %s313, %s314
      %p318 = pneg %p312
      %p319 = scmp.eq.s32.totalorder %s37, 1
      %p320 = por %p318, %p319
      %p321 = scmp.ne.s32.totalorder %s313, %s316
      %p322 = scmp.eq.s32.totalorder %s37, 0
      %p323 = por %p321, %p322
      %p324 = scmp.ne.s32.totalorder %s313, %s316
      %p325 = scmp.eq.s32.totalorder %s42, 1
      %p326 = por %p324, %p325
      %p327 = scmp.ne.s32.totalorder %s316, %s317
      %p328 = scmp.eq.s32.totalorder %s42, 0
      %p329 = por %p327, %p328
      %p330 = scmp.ne.s32.totalorder %s316, %s317
      %p331 = scmp.eq.s32.totalorder %s43, 1
      %p332 = por %p330, %p331
      %p334 = scmp.ne.s32.totalorder %s317, %s333
      %p335 = scmp.eq.s32.totalorder %s43, 0
      %p336 = por %p334, %p335
      %s337 = ssub.s32 %s37, %s44
      %p338 = scmp.eq.s32.totalorder %s337, 0
      %s340 = sadd.s32 %s339, 1
      %s341 = scalar_select %p338, %s339, %s340
      %p344 = pneg %p338
      %p345 = scmp.eq.s32.totalorder %s37, 1
      %p346 = por %p344, %p345
      %p347 = scmp.ne.s32.totalorder %s339, %s342
      %p348 = scmp.eq.s32.totalorder %s37, 0
      %p349 = por %p347, %p348
      %p350 = scmp.ne.s32.totalorder %s339, %s342
      %p351 = scmp.eq.s32.totalorder %s42, 1
      %p352 = por %p350, %p351
      %p353 = scmp.ne.s32.totalorder %s342, %s343
      %p354 = scmp.eq.s32.totalorder %s42, 0
      %p355 = por %p353, %p354
      %p356 = scmp.ne.s32.totalorder %s342, %s343
      %p357 = scmp.eq.s32.totalorder %s43, 1
      %p358 = por %p356, %p357
      %p360 = scmp.ne.s32.totalorder %s343, %s359
      %p361 = scmp.eq.s32.totalorder %s43, 0
      %p362 = por %p360, %p361
      %s363 = ssub.s32 %s37, %s44
      %p364 = scmp.eq.s32.totalorder %s363, 0
      %s366 = sadd.s32 %s365, 1
      %s367 = scalar_select %p364, %s365, %s366
      %p370 = pneg %p364
      %p371 = scmp.eq.s32.totalorder %s37, 1
      %p372 = por %p370, %p371
      %p373 = scmp.ne.s32.totalorder %s365, %s368
      %p374 = scmp.eq.s32.totalorder %s37, 0
      %p375 = por %p373, %p374
      %p376 = scmp.ne.s32.totalorder %s365, %s368
      %p377 = scmp.eq.s32.totalorder %s42, 1
      %p378 = por %p376, %p377
      %p379 = scmp.ne.s32.totalorder %s368, %s369
      %p380 = scmp.eq.s32.totalorder %s42, 0
      %p381 = por %p379, %p380
      %p382 = scmp.ne.s32.totalorder %s368, %s369
      %p383 = scmp.eq.s32.totalorder %s43, 1
      %p384 = por %p382, %p383
      %p386 = scmp.ne.s32.totalorder %s369, %s385
      %p387 = scmp.eq.s32.totalorder %s43, 0
      %p388 = por %p386, %p387
      %s389 = ssub.s32 %s37, %s44
      %p390 = scmp.eq.s32.totalorder %s389, 0
      %s392 = sadd.s32 %s391, 1
      %s393 = scalar_select %p390, %s391, %s392
      %p396 = pneg %p390
      %p397 = scmp.eq.s32.totalorder %s37, 1
      %p398 = por %p396, %p397
      %p399 = scmp.ne.s32.totalorder %s391, %s394
      %p400 = scmp.eq.s32.totalorder %s37, 0
      %p401 = por %p399, %p400
      %p402 = scmp.ne.s32.totalorder %s391, %s394
      %p403 = scmp.eq.s32.totalorder %s42, 1
      %p404 = por %p402, %p403
      %p405 = scmp.ne.s32.totalorder %s394, %s395
      %p406 = scmp.eq.s32.totalorder %s42, 0
      %p407 = por %p405, %p406
      %p408 = scmp.ne.s32.totalorder %s394, %s395
      %p409 = scmp.eq.s32.totalorder %s43, 1
      %p410 = por %p408, %p409
      %p412 = scmp.ne.s32.totalorder %s395, %s411
      %p413 = scmp.eq.s32.totalorder %s43, 0
      %p414 = por %p412, %p413
      %s415 = ssub.s32 %s37, %s44
      %p416 = scmp.eq.s32.totalorder %s415, 0
      %s418 = sadd.s32 %s417, 1
      %s419 = scalar_select %p416, %s417, %s418
      %p422 = pneg %p416
      %p423 = scmp.eq.s32.totalorder %s37, 1
      %p424 = por %p422, %p423
      %p425 = scmp.ne.s32.totalorder %s417, %s420
      %p426 = scmp.eq.s32.totalorder %s37, 0
      %p427 = por %p425, %p426
      %p428 = scmp.ne.s32.totalorder %s417, %s420
      %p429 = scmp.eq.s32.totalorder %s42, 1
      %p430 = por %p428, %p429
      %p431 = scmp.ne.s32.totalorder %s420, %s421
      %p432 = scmp.eq.s32.totalorder %s42, 0
      %p433 = por %p431, %p432
      %p434 = scmp.ne.s32.totalorder %s420, %s421
      %p435 = scmp.eq.s32.totalorder %s43, 1
      %p436 = por %p434, %p435
      %p438 = scmp.ne.s32.totalorder %s421, %s437
      %p439 = scmp.eq.s32.totalorder %s43, 0
      %p440 = por %p438, %p439
      %s442 = sadd.s32 %s441, 1
      %p445 = scmp.eq.s32.totalorder %s37, 1
      %p446 = scmp.ne.s32.totalorder %s441, %s443
      %p447 = scmp.eq.s32.totalorder %s37, 0
      %p448 = por %p446, %p447
      %p449 = scmp.ne.s32.totalorder %s441, %s443
      %p450 = scmp.eq.s32.totalorder %s42, 1
      %p451 = por %p449, %p450
      %p452 = scmp.ne.s32.totalorder %s443, %s444
      %p453 = scmp.eq.s32.totalorder %s42, 0
      %p454 = por %p452, %p453
      %p455 = scmp.ne.s32.totalorder %s443, %s444
      %p456 = scmp.eq.s32.totalorder %s43, 1
      %p457 = por %p455, %p456
      %p459 = scmp.ne.s32.totalorder %s444, %s458
      %p460 = scmp.eq.s32.totalorder %s43, 0
      %p461 = por %p459, %p460
      %s463 = sadd.s32 %s462, 1
      %p466 = scmp.eq.s32.totalorder %s37, 1
      %p467 = scmp.ne.s32.totalorder %s462, %s464
      %p468 = scmp.eq.s32.totalorder %s37, 0
      %p469 = por %p467, %p468
      %p470 = scmp.ne.s32.totalorder %s462, %s464
      %p471 = scmp.eq.s32.totalorder %s42, 1
      %p472 = por %p470, %p471
      %p473 = scmp.ne.s32.totalorder %s464, %s465
      %p474 = scmp.eq.s32.totalorder %s42, 0
      %p475 = por %p473, %p474
      %p476 = scmp.ne.s32.totalorder %s464, %s465
      %p477 = scmp.eq.s32.totalorder %s43, 1
      %p478 = por %p476, %p477
      %p480 = scmp.ne.s32.totalorder %s465, %s479
      %p481 = scmp.eq.s32.totalorder %s43, 0
      %p482 = por %p480, %p481
      %s484 = sadd.s32 %s483, 1
      %p487 = scmp.eq.s32.totalorder %s37, 1
      %p488 = scmp.ne.s32.totalorder %s483, %s485
      %p489 = scmp.eq.s32.totalorder %s37, 0
      %p490 = por %p488, %p489
      %p491 = scmp.ne.s32.totalorder %s483, %s485
      %p492 = scmp.eq.s32.totalorder %s42, 1
      %p493 = por %p491, %p492
      %p494 = scmp.ne.s32.totalorder %s485, %s486
      %p495 = scmp.eq.s32.totalorder %s42, 0
      %p496 = por %p494, %p495
      %p497 = scmp.ne.s32.totalorder %s485, %s486
      %p498 = scmp.eq.s32.totalorder %s43, 1
      %p499 = por %p497, %p498
      %p501 = scmp.ne.s32.totalorder %s486, %s500
      %p502 = scmp.eq.s32.totalorder %s43, 0
      %p503 = por %p501, %p502
      %s505 = sadd.s32 %s504, 1
      %p508 = scmp.eq.s32.totalorder %s37, 1
      %p509 = scmp.ne.s32.totalorder %s504, %s506
      %p510 = scmp.eq.s32.totalorder %s37, 0
      %p511 = por %p509, %p510
      %p512 = scmp.ne.s32.totalorder %s504, %s506
      %p513 = scmp.eq.s32.totalorder %s42, 1
      %p514 = por %p512, %p513
      %p515 = scmp.ne.s32.totalorder %s506, %s507
      %p516 = scmp.eq.s32.totalorder %s42, 0
      %p517 = por %p515, %p516
      %p518 = scmp.ne.s32.totalorder %s506, %s507
      %p519 = scmp.eq.s32.totalorder %s43, 1
      %p520 = por %p518, %p519
      %p522 = scmp.ne.s32.totalorder %s507, %s521
      %p523 = scmp.eq.s32.totalorder %s43, 0
      %p524 = por %p522, %p523
      %s526 = sadd.s32 %s525, 1
      %p529 = scmp.eq.s32.totalorder %s37, 1
      %p530 = scmp.ne.s32.totalorder %s525, %s527
      %p531 = scmp.eq.s32.totalorder %s37, 0
      %p532 = por %p530, %p531
      %p533 = scmp.ne.s32.totalorder %s525, %s527
      %p534 = scmp.eq.s32.totalorder %s42, 1
      %p535 = por %p533, %p534
      %p536 = scmp.ne.s32.totalorder %s527, %s528
      %p537 = scmp.eq.s32.totalorder %s42, 0
      %p538 = por %p536, %p537
      %p539 = scmp.ne.s32.totalorder %s527, %s528
      %p540 = scmp.eq.s32.totalorder %s43, 1
      %p541 = por %p539, %p540
      %p543 = scmp.ne.s32.totalorder %s528, %s542
      %p544 = scmp.eq.s32.totalorder %s43, 0
      %p545 = por %p543, %p544
      %s547 = sadd.s32 %s546, 1
      %p550 = scmp.eq.s32.totalorder %s37, 1
      %p551 = scmp.ne.s32.totalorder %s546, %s548
      %p552 = scmp.eq.s32.totalorder %s37, 0
      %p553 = por %p551, %p552
      %p554 = scmp.ne.s32.totalorder %s546, %s548
      %p555 = scmp.eq.s32.totalorder %s42, 1
      %p556 = por %p554, %p555
      %p557 = scmp.ne.s32.totalorder %s548, %s549
      %p558 = scmp.eq.s32.totalorder %s42, 0
      %p559 = por %p557, %p558
      %p560 = scmp.ne.s32.totalorder %s548, %s549
      %p561 = scmp.eq.s32.totalorder %s43, 1
      %p562 = por %p560, %p561
      %p564 = scmp.ne.s32.totalorder %s549, %s563
      %p565 = scmp.eq.s32.totalorder %s43, 0
      %p566 = por %p564, %p565
      %p567 = scmp.le.s32.totalorder 1, %s37
      %p568 = scmp.lt.s32.totalorder %s37, 3
      %p569 = pnand %p567, %p568
      %p570 = pneg %p569
      // Predicated region
      $region9: #{custom_model_forward.1} parent=5 // pred_check
        _
      $region10: #{custom_model_forward.1} parent=5 // pred_check_branch
        %572 = sbr.rel (%p569) target = $region12
      $region11: #{custom_model_forward.1} parent=5 // pred_region
        %s573 = ssub.s32 %s37, 1
        // Predicated region
        $region13: #{custom_model_forward.1} parent=11 // pred_check
          %p574 = pneg %p58
        $region14: #{custom_model_forward.1} parent=11 // pred_check_branch
          %576 = sbr.rel (%p574) target = $region16
        $region15: #{custom_model_forward.1} parent=11 // pred_region
          _
        $region16: #{custom_model_forward.1} parent=11 // pred_fallthru
          _
        // Predicated region
        $region17: #{custom_model_forward.1} parent=11 // pred_check
          %p577 = pneg %p79
        $region18: #{custom_model_forward.1} parent=11 // pred_check_branch
          %579 = sbr.rel (%p577) target = $region20
        $region19: #{custom_model_forward.1} parent=11 // pred_region
          _
        $region20: #{custom_model_forward.1} parent=11 // pred_fallthru
          _
        // Predicated region
        $region21: #{custom_model_forward.1} parent=11 // pred_check
          %p580 = pneg %p100
        $region22: #{custom_model_forward.1} parent=11 // pred_check_branch
          %582 = sbr.rel (%p580) target = $region24
        $region23: #{custom_model_forward.1} parent=11 // pred_region
          _
        $region24: #{custom_model_forward.1} parent=11 // pred_fallthru
          _
        // Predicated region
        $region25: #{custom_model_forward.1} parent=11 // pred_check
          %p583 = pneg %p121
        $region26: #{custom_model_forward.1} parent=11 // pred_check_branch
          %585 = sbr.rel (%p583) target = $region28
        $region27: #{custom_model_forward.1} parent=11 // pred_region
          _
        $region28: #{custom_model_forward.1} parent=11 // pred_fallthru
          _
        // Predicated region
        $region29: #{custom_model_forward.1} parent=11 // pred_check
          %p586 = pneg %p454
        $region30: #{custom_model_forward.1} parent=11 // pred_check_branch
          %588 = sbr.rel (%p586) target = $region32
        $region31: #{custom_model_forward.1} parent=11 // pred_region
          %s590 = ssub.s32 1024, 1024
          %591 = vsyncadd [#allocation9], %s590
          %s592 = sshll.u32 [#allocation8], 4
          %s593 = int_to_ptr.vmem [resolvable:$true] %s592
          %598 = dma.hbm_to_vmem [thread:$0]  %s16, 1024, %s593, [#allocation9], 64, 64, 4
        $region32: #{custom_model_forward.1} parent=11 // pred_fallthru
          _
        // Predicated region
        $region33: #{custom_model_forward.1} parent=11 // pred_check
          %p599 = pneg %p475
        $region34: #{custom_model_forward.1} parent=11 // pred_check_branch
          %601 = sbr.rel (%p599) target = $region36
        $region35: #{custom_model_forward.1} parent=11 // pred_region
          _
        $region36: #{custom_model_forward.1} parent=11 // pred_fallthru
          _
        // Predicated region
        $region37: #{custom_model_forward.1} parent=11 // pred_check
          %p602 = pneg %p496
        $region38: #{custom_model_forward.1} parent=11 // pred_check_branch
          %604 = sbr.rel (%p602) target = $region40
        $region39: #{custom_model_forward.1} parent=11 // pred_region
          _
        $region40: #{custom_model_forward.1} parent=11 // pred_fallthru
          _
      $region12: #{custom_model_forward.1} parent=5 // pred_fallthru
        _
      %p605 = scmp.lt.s32.totalorder %s37, 2
      // Predicated region
      $region41: #{custom_model_forward.1} parent=5 // pred_check
        %p606 = pneg %p605
      $region42: #{custom_model_forward.1} parent=5 // pred_check_branch
        %608 = sbr.rel (%p606) target = $region44
      $region43: #{custom_model_forward.1} parent=5 // pred_region
        // Predicated region
        $region45: #{custom_model_forward.1} parent=43 // pred_check
          %p609 = pneg %p141
        $region46: #{custom_model_forward.1} parent=43 // pred_check_branch
          %611 = sbr.rel (%p609) target = $region48
        $region47: #{custom_model_forward.1} parent=43 // pred_region
          %p612 = scmp.lt.s32.totalorder %s37, 1
          %s613 = scalar_select %p612, %s37, 1
          %s614 = smul.addr %s613, 48
          %s615 = smul.addr %s614, 4
          %s616 = scalar_lea.vmem %s4, %s615
        $region48: #{custom_model_forward.1} parent=43 // pred_fallthru
          _
        // Predicated region
        $region49: #{custom_model_forward.1} parent=43 // pred_check
          %p617 = pneg %p167
        $region50: #{custom_model_forward.1} parent=43 // pred_check_branch
          %619 = sbr.rel (%p617) target = $region52
        $region51: #{custom_model_forward.1} parent=43 // pred_region
          %p620 = scmp.lt.s32.totalorder %s37, 1
          %s621 = scalar_select %p620, %s37, 1
          %s622 = smul.addr %s621, 3
          %s623 = scalar_lea.vmem %s5, %s622
        $region52: #{custom_model_forward.1} parent=43 // pred_fallthru
          _
        // Predicated region
        $region53: #{custom_model_forward.1} parent=43 // pred_check
          %p624 = pneg %p193
        $region54: #{custom_model_forward.1} parent=43 // pred_check_branch
          %626 = sbr.rel (%p624) target = $region56
        $region55: #{custom_model_forward.1} parent=43 // pred_region
          %s627 = sand.u32 %s183, 1
          %s628 = scalar_lea.sflag [#allocation3], %s627
          %s629 = sand.u32 %s183, 1
          %s630 = smul.addr %s629, 64
          %s631 = scalar_lea.vmem [#allocation2], %s630
          %s633 = ssub.s32 1024, 1024
          %634 = vsyncadd %s628, %s633
          %s635 = smul.addr %s37, 16
          %s636 = smul.addr %s635, 64
          %s637 = scalar_lea.hbm %s6, %s636
          %s638 = sshll.u32 %s631, 4
          %s639 = int_to_ptr.vmem [resolvable:$true] %s638
          %644 = dma.hbm_to_vmem [thread:$0]  %s637, 1024, %s639, %s628, 64, 64, 4
        $region56: #{custom_model_forward.1} parent=43 // pred_fallthru
          _
        // Predicated region
        $region57: #{custom_model_forward.1} parent=43 // pred_check
          %p645 = pneg %p219
        $region58: #{custom_model_forward.1} parent=43 // pred_check_branch
          %647 = sbr.rel (%p645) target = $region60
        $region59: #{custom_model_forward.1} parent=43 // pred_region
          %p648 = scmp.lt.s32.totalorder %s37, 1
          %s649 = scalar_select %p648, %s37, 1
          %s650 = scalar_lea.vmem %s7, %s649
        $region60: #{custom_model_forward.1} parent=43 // pred_fallthru
          _
        // Predicated region
        $region61: #{custom_model_forward.1} parent=43 // pred_check
          %p651 = pneg %p245
        $region62: #{custom_model_forward.1} parent=43 // pred_check_branch
          %653 = sbr.rel (%p651) target = $region64
        $region63: #{custom_model_forward.1} parent=43 // pred_region
          %p654 = scmp.lt.s32.totalorder %s37, 1
          %s655 = scalar_select %p654, %s37, 1
          %s656 = scalar_lea.vmem %s8, %s655
        $region64: #{custom_model_forward.1} parent=43 // pred_fallthru
          _
        // Predicated region
        $region65: #{custom_model_forward.1} parent=43 // pred_check
          %p657 = pneg %p271
        $region66: #{custom_model_forward.1} parent=43 // pred_check_branch
          %659 = sbr.rel (%p657) target = $region68
        $region67: #{custom_model_forward.1} parent=43 // pred_region
          %p660 = scmp.lt.s32.totalorder %s37, 1
          %s661 = scalar_select %p660, %s37, 1
          %s662 = scalar_lea.vmem %s9, %s661
        $region68: #{custom_model_forward.1} parent=43 // pred_fallthru
          _
        // Predicated region
        $region69: #{custom_model_forward.1} parent=43 // pred_check
          %p663 = pneg %p297
        $region70: #{custom_model_forward.1} parent=43 // pred_check_branch
          %665 = sbr.rel (%p663) target = $region72
        $region71: #{custom_model_forward.1} parent=43 // pred_region
          %s666 = sand.u32 %s37, 1
          %s667 = scalar_lea.sflag [#allocation6], %s666
          %s668 = sand.u32 %s287, 1
          %s669 = smul.addr %s668, 128
          %s670 = scalar_lea.vmem [#allocation5], %s669
          %s672 = ssub.s32 2048, 2048
          %673 = vsyncadd %s667, %s672
          %s674 = smul.addr %s37, 32
          %s675 = smul.addr %s674, 64
          %s676 = scalar_lea.hbm %s10, %s675
          %s677 = sshll.u32 %s670, 4
          %s678 = int_to_ptr.vmem [resolvable:$true] %s677
          %683 = dma.hbm_to_vmem [thread:$0]  %s676, 2048, %s678, %s667, 128, 128, 8
        $region72: #{custom_model_forward.1} parent=43 // pred_fallthru
          _
        // Predicated region
        $region73: #{custom_model_forward.1} parent=43 // pred_check
          %p684 = pneg %p323
        $region74: #{custom_model_forward.1} parent=43 // pred_check_branch
          %686 = sbr.rel (%p684) target = $region76
        $region75: #{custom_model_forward.1} parent=43 // pred_region
          %p687 = scmp.lt.s32.totalorder %s37, 1
          %s688 = scalar_select %p687, %s37, 1
          %s689 = smul.addr %s688, 2
          %s690 = scalar_lea.vmem %s11, %s689
        $region76: #{custom_model_forward.1} parent=43 // pred_fallthru
          _
        // Predicated region
        $region77: #{custom_model_forward.1} parent=43 // pred_check
          %p691 = pneg %p349
        $region78: #{custom_model_forward.1} parent=43 // pred_check_branch
          %693 = sbr.rel (%p691) target = $region80
        $region79: #{custom_model_forward.1} parent=43 // pred_region
          %s694 = sand.u32 %s37, 1
          %s695 = scalar_lea.sflag [#allocation6], %s694
          %s696 = sand.u32 %s339, 1
          %s697 = smul.addr %s696, 128
          %s698 = scalar_lea.vmem [#allocation7], %s697
          %s700 = ssub.s32 2048, 2048
          %701 = vsyncadd %s695, %s700
          %s702 = smul.addr %s37, 32
          %s703 = smul.addr %s702, 64
          %s704 = scalar_lea.hbm %s12, %s703
          %s705 = sshll.u32 %s698, 4
          %s706 = int_to_ptr.vmem [resolvable:$true] %s705
          %711 = dma.hbm_to_vmem [thread:$0]  %s704, 2048, %s706, %s695, 64, 64, 4
        $region80: #{custom_model_forward.1} parent=43 // pred_fallthru
          _
        // Predicated region
        $region81: #{custom_model_forward.1} parent=43 // pred_check
          %p712 = pneg %p375
        $region82: #{custom_model_forward.1} parent=43 // pred_check_branch
          %714 = sbr.rel (%p712) target = $region84
        $region83: #{custom_model_forward.1} parent=43 // pred_region
          %p715 = scmp.lt.s32.totalorder %s37, 1
          %s716 = scalar_select %p715, %s37, 1
          %s717 = scalar_lea.vmem %s13, %s716
        $region84: #{custom_model_forward.1} parent=43 // pred_fallthru
          _
        // Predicated region
        $region85: #{custom_model_forward.1} parent=43 // pred_check
          %p718 = pneg %p401
        $region86: #{custom_model_forward.1} parent=43 // pred_check_branch
          %720 = sbr.rel (%p718) target = $region88
        $region87: #{custom_model_forward.1} parent=43 // pred_region
          %p721 = scmp.lt.s32.totalorder %s37, 1
          %s722 = scalar_select %p721, %s37, 1
          %s723 = scalar_lea.vmem %s14, %s722
        $region88: #{custom_model_forward.1} parent=43 // pred_fallthru
          _
        // Predicated region
        $region89: #{custom_model_forward.1} parent=43 // pred_check
          %p724 = pneg %p427
        $region90: #{custom_model_forward.1} parent=43 // pred_check_branch
          %726 = sbr.rel (%p724) target = $region92
        $region91: #{custom_model_forward.1} parent=43 // pred_region
          %p727 = scmp.lt.s32.totalorder %s37, 1
          %s728 = scalar_select %p727, %s37, 1
          %s729 = scalar_lea.vmem %s15, %s728
        $region92: #{custom_model_forward.1} parent=43 // pred_fallthru
          _
      $region44: #{custom_model_forward.1} parent=5 // pred_fallthru
        _
      %p730 = scmp.le.s32.totalorder 1, %s37
      %p731 = scmp.lt.s32.totalorder %s37, 3
      %p732 = pnand %p730, %p731
      %p733 = pneg %p732
      // Predicated region
      $region93: #{custom_model_forward.1} parent=5 // pred_check
        _
      $region94: #{custom_model_forward.1} parent=5 // pred_check_branch
        %735 = sbr.rel (%p732) target = $region96
      $region95: #{custom_model_forward.1} parent=5 // pred_region
        %s736 = ssub.s32 %s37, 1
        %s737 = sand.u32 %s186, 1
        %s738 = scalar_lea.sflag [#allocation3], %s737
        %s739 = sand.u32 %s186, 1
        %s740 = smul.addr %s739, 64
        %s741 = scalar_lea.vmem [#allocation2], %s740
        // Predicated region
        $region97: #{custom_model_forward.1} parent=95 // pred_check
          %p742 = pneg %p199
        $region98: #{custom_model_forward.1} parent=95 // pred_check_branch
          %744 = sbr.rel (%p742) target = $region100
        $region99: #{custom_model_forward.1} parent=95 // pred_region
          %745 = dma.done %s738, 1024
        $region100: #{custom_model_forward.1} parent=95 // pred_fallthru
          _
        %s746 = sand.u32 %s42, 1
        %s747 = scalar_lea.sflag [#allocation6], %s746
        %s748 = sand.u32 %s290, 1
        %s749 = smul.addr %s748, 128
        %s750 = scalar_lea.vmem [#allocation5], %s749
        // Predicated region
        $region101: #{custom_model_forward.1} parent=95 // pred_check
          %p751 = pneg %p303
        $region102: #{custom_model_forward.1} parent=95 // pred_check_branch
          %753 = sbr.rel (%p751) target = $region104
        $region103: #{custom_model_forward.1} parent=95 // pred_region
          %754 = dma.done %s747, 2048
        $region104: #{custom_model_forward.1} parent=95 // pred_fallthru
          _
        %s755 = sand.u32 %s42, 1
        %s756 = scalar_lea.sflag [#allocation6], %s755
        %s757 = sand.u32 %s342, 1
        %s758 = smul.addr %s757, 128
        %s759 = scalar_lea.vmem [#allocation7], %s758
        // Predicated region
        $region105: #{custom_model_forward.1} parent=95 // pred_check
          %p760 = pneg %p355
        $region106: #{custom_model_forward.1} parent=95 // pred_check_branch
          %762 = sbr.rel (%p760) target = $region108
        $region107: #{custom_model_forward.1} parent=95 // pred_region
          %763 = dma.done %s756, 2048
        $region108: #{custom_model_forward.1} parent=95 // pred_fallthru
          _
        // Predicated region
        $region109: #{custom_model_forward.1} parent=95 // pred_check
          %p764 = pneg %p454
        $region110: #{custom_model_forward.1} parent=95 // pred_check_branch
          %766 = sbr.rel (%p764) target = $region112
        $region111: #{custom_model_forward.1} parent=95 // pred_region
          %767 = dma.done [#allocation9], 1024
        $region112: #{custom_model_forward.1} parent=95 // pred_fallthru
          _
        %p768 = pneg %p58
        %p769 = pneg %p55
        %p770 = pneg %p79
        %p771 = pneg %p76
        %p772 = pneg %p100
        %p773 = pneg %p97
        %p774 = pneg %p121
        %p775 = pneg %p118
        %p776 = scmp.lt.s32.totalorder %s42, 1
        %s777 = scalar_select %p776, %s42, 1
        %s778 = smul.addr %s777, 48
        %s779 = smul.addr %s778, 4
        %s780 = scalar_lea.vmem %s4, %s779
        %p781 = pneg %p147
        %p782 = pneg %p144
        %p783 = scmp.lt.s32.totalorder %s42, 1
        %s784 = scalar_select %p783, %s42, 1
        %s785 = smul.addr %s784, 3
        %s786 = scalar_lea.vmem %s5, %s785
        %p787 = pneg %p173
        %p788 = pneg %p170
        %s789 = sand.u32 %s186, 1
        %s790 = scalar_lea.sflag [#allocation3], %s789
        %s791 = sand.u32 %s186, 1
        %s792 = smul.addr %s791, 64
        %s793 = scalar_lea.vmem [#allocation2], %s792
        %p794 = pneg %p199
        %p795 = pneg %p196
        %p796 = scmp.lt.s32.totalorder %s42, 1
        %s797 = scalar_select %p796, %s42, 1
        %s798 = scalar_lea.vmem %s7, %s797
        %p799 = pneg %p225
        %p800 = pneg %p222
        %p801 = scmp.lt.s32.totalorder %s42, 1
        %s802 = scalar_select %p801, %s42, 1
        %s803 = scalar_lea.vmem %s8, %s802
        %p804 = pneg %p251
        %p805 = pneg %p248
        %p806 = scmp.lt.s32.totalorder %s42, 1
        %s807 = scalar_select %p806, %s42, 1
        %s808 = scalar_lea.vmem %s9, %s807
        %p809 = pneg %p277
        %p810 = pneg %p274
        %s811 = sand.u32 %s42, 1
        %s812 = scalar_lea.sflag [#allocation6], %s811
        %s813 = sand.u32 %s290, 1
        %s814 = smul.addr %s813, 128
        %s815 = scalar_lea.vmem [#allocation5], %s814
        %p816 = pneg %p303
        %p817 = pneg %p300
        %p818 = scmp.lt.s32.totalorder %s42, 1
        %s819 = scalar_select %p818, %s42, 1
        %s820 = smul.addr %s819, 2
        %s821 = scalar_lea.vmem %s11, %s820
        %p822 = pneg %p329
        %p823 = pneg %p326
        %s824 = sand.u32 %s42, 1
        %s825 = scalar_lea.sflag [#allocation6], %s824
        %s826 = sand.u32 %s342, 1
        %s827 = smul.addr %s826, 128
        %s828 = scalar_lea.vmem [#allocation7], %s827
        %p829 = pneg %p355
        %p830 = pneg %p352
        %p831 = scmp.lt.s32.totalorder %s42, 1
        %s832 = scalar_select %p831, %s42, 1
        %s833 = scalar_lea.vmem %s13, %s832
        %p834 = pneg %p381
        %p835 = pneg %p378
        %p836 = scmp.lt.s32.totalorder %s42, 1
        %s837 = scalar_select %p836, %s42, 1
        %s838 = scalar_lea.vmem %s14, %s837
        %p839 = pneg %p407
        %p840 = pneg %p404
        %p841 = scmp.lt.s32.totalorder %s42, 1
        %s842 = scalar_select %p841, %s42, 1
        %s843 = scalar_lea.vmem %s15, %s842
        %p844 = pneg %p433
        %p845 = pneg %p430
        %p846 = pneg %p454
        %p847 = pneg %p451
        %p848 = pneg %p475
        %p849 = pneg %p472
        %p850 = pneg %p496
        %p851 = pneg %p493
        %p852 = pneg %p517
        %p853 = pneg %p514
        %p854 = pneg %p538
        %p855 = pneg %p535
        %p856 = pneg %p559
        %p857 = pneg %p556
        %p858 = scmp.lt.s32.totalorder %s42, 1
        %s859 = scalar_select %p858, %s42, 1
        %s860 = smul.addr %s859, 48
        %s861 = smul.addr %s860, 4
        %s862 = scalar_lea.vmem %s4, %s861
        %p863 = scmp.lt.s32.totalorder %s42, 1
        %s864 = scalar_select %p863, %s42, 1
        %s865 = smul.addr %s864, 3
        %s866 = scalar_lea.vmem %s5, %s865
        %p867 = scmp.lt.s32.totalorder %s42, 1
        %s868 = scalar_select %p867, %s42, 1
        %s869 = scalar_lea.vmem %s7, %s868
        %p870 = scmp.lt.s32.totalorder %s42, 1
        %s871 = scalar_select %p870, %s42, 1
        %s872 = scalar_lea.vmem %s8, %s871
        %p873 = scmp.lt.s32.totalorder %s42, 1
        %s874 = scalar_select %p873, %s42, 1
        %s875 = scalar_lea.vmem %s9, %s874
        %p876 = scmp.lt.s32.totalorder %s42, 1
        %s877 = scalar_select %p876, %s42, 1
        %s878 = smul.addr %s877, 2
        %s879 = scalar_lea.vmem %s11, %s878
        %p880 = scmp.lt.s32.totalorder %s42, 1
        %s881 = scalar_select %p880, %s42, 1
        %s882 = scalar_lea.vmem %s13, %s881
        %p883 = scmp.lt.s32.totalorder %s42, 1
        %s884 = scalar_select %p883, %s42, 1
        %s885 = scalar_lea.vmem %s14, %s884
        %p886 = scmp.lt.s32.totalorder %s42, 1
        %s887 = scalar_select %p886, %s42, 1
        %s888 = scalar_lea.vmem %s15, %s887
        %p890 = scmp.eq.s32.totalorder %s42, 0
        // Predicated region
        $region113: #{custom_model_forward.1} parent=95 // pred_check
          %p891 = pneg %p890
        $region114: #{custom_model_forward.1} parent=95 // pred_check_branch
          %893 = sbr.rel (%p891) target = $region116
        $region115: #{custom_model_forward.1} parent=95 // pred_region
          %v894 = vld [vmem:[%s0] sm:$0xff]
          %v895 = vld [vmem:[%s0 + $0x8] sm:$0xff]
          %v896 = vld [vmem:[%s2] sm:$0x1]
          %v897 = vld [vmem:[%s3] sm:$0x1]
          %898 = vadd.xlane.f32.xlu0 %v894
          %v899 = vpop.xlane.xlu0 %898
          %900 = vadd.xlane.f32.xlu0 %v895
          %v901 = vpop.xlane.xlu0 %900
          %v902 = vrcp.pop 128.0
          %v903 = vmul.f32 %v899, %v902
          %v904 = vmul.f32 %v901, %v902
          %v905 = vsub.f32 %v894, %v903
          %v906 = vsub.f32 %v895, %v904
          %v907 = vmul.f32 %v905, %v905
          %v908 = vmul.f32 %v906, %v906
          %909 = vadd.xlane.f32.xlu0 %v907
          %v910 = vpop.xlane.xlu0 %909
          %911 = vadd.xlane.f32.xlu0 %v908
          %v912 = vpop.xlane.xlu0 %911
          %v913 = vmul.f32 %v910, %v902
          %v914 = vmul.f32 %v912, %v902
          %v915 = vadd.f32 %v913, 1e-05
          %v916 = vadd.f32 %v914, 1e-05
          %v917 = vrsqrt.pop %v915
          %v918 = vrsqrt.pop %v916
          %v919 = vmul.f32 %v905, %v917
          %v920 = vmul.f32 %v906, %v918
          %v922 = vlaneseq
          %v923 = vshrl.u32 %v922, 7
          %v924 = vsub.s32 0, %v923
          %v925 = vrot.slane %v896, %v924
          %v927 = vmul.f32 %v919, %v925
          %v928 = vmul.f32 %v920, %v925
          %v930 = vlaneseq
          %v931 = vshrl.u32 %v930, 7
          %v932 = vsub.s32 0, %v931
          %v933 = vrot.slane %v897, %v932
          %v935 = vadd.f32 %v927, %v933
          %v936 = vadd.f32 %v928, %v933
          %937 = vst [vmem:[#allocation10] sm:$0xff] %v935
          %938 = vst [vmem:[#allocation10 + $0x8] sm:$0xff] %v936
        $region116: #{custom_model_forward.1} parent=95 // pred_fallthru
          _
        %v939 = vld [vmem:[#allocation10] sm:$0xff]
        %v940 = vld [vmem:[#allocation10 + $0x8] sm:$0xff]
        %v941 = vpack.c.bf16 %v940, %v939
        %v942 = vld [vmem:[%s862] sm:$0xff]
        %v943 = vld [vmem:[%s862 + $0x8] sm:$0xf]
        %v944 = vld [vmem:[%s862 + $0xc] sm:$0xff]
        %v945 = vld [vmem:[%s862 + $0x14] sm:$0xf]
        %v946 = vld [vmem:[%s862 + $0x18] sm:$0xff]
        %v947 = vld [vmem:[%s862 + $0x20] sm:$0xf]
        %v948 = vld [vmem:[%s862 + $0x24] sm:$0xff]
        %v949 = vld [vmem:[%s862 + $0x2c] sm:$0xf]
        %v950 = vld [vmem:[%s862 + $0x30] sm:$0xff]
        %v951 = vld [vmem:[%s862 + $0x38] sm:$0xf]
        %v952 = vld [vmem:[%s862 + $0x3c] sm:$0xff]
        %v953 = vld [vmem:[%s862 + $0x44] sm:$0xf]
        %v954 = vld [vmem:[%s862 + $0x48] sm:$0xff]
        %v955 = vld [vmem:[%s862 + $0x50] sm:$0xf]
        %v956 = vld [vmem:[%s862 + $0x54] sm:$0xff]
        %v957 = vld [vmem:[%s862 + $0x5c] sm:$0xf]
        %v958 = vld [vmem:[%s862 + $0x60] sm:$0xff]
        %v959 = vld [vmem:[%s862 + $0x68] sm:$0xf]
        %v960 = vld [vmem:[%s862 + $0x6c] sm:$0xff]
        %v961 = vld [vmem:[%s862 + $0x74] sm:$0xf]
        %v962 = vld [vmem:[%s862 + $0x78] sm:$0xff]
        %v963 = vld [vmem:[%s862 + $0x80] sm:$0xf]
        %v964 = vld [vmem:[%s862 + $0x84] sm:$0xff]
        %v965 = vld [vmem:[%s862 + $0x8c] sm:$0xf]
        %v966 = vld [vmem:[%s862 + $0x90] sm:$0xff]
        %v967 = vld [vmem:[%s862 + $0x98] sm:$0xf]
        %v968 = vld [vmem:[%s862 + $0x9c] sm:$0xff]
        %v969 = vld [vmem:[%s862 + $0xa4] sm:$0xf]
        %v970 = vld [vmem:[%s862 + $0xa8] sm:$0xff]
        %v971 = vld [vmem:[%s862 + $0xb0] sm:$0xf]
        %v972 = vld [vmem:[%s862 + $0xb4] sm:$0xff]
        %v973 = vld [vmem:[%s862 + $0xbc] sm:$0xf]
        %v974 = vld [vmem:[%s866] sm:$0x7]
        %v976 = vlaneseq
        %v977 = vshrl.u32 %v976, 7
        %v978 = vsub.s32 0, %v977
        %v979 = vrot.slane %v974, %v978
        %v980 = vlaneseq
        %v981 = vshrl.u32 %v980, 7
        %v982 = vsub.s32 1, %v981
        %v983 = vrot.slane %v974, %v982
        %v984 = vlaneseq
        %v985 = vshrl.u32 %v984, 7
        %v986 = vsub.s32 2, %v985
        %v987 = vrot.slane %v974, %v986
        %v1023 = vunpack.c.l.b16 %v942
        %v1024 = vunpack.c.h.b16 %v942
        %v1025 = vunpack.c.l.b16 %v943
        %v1026 = vunpack.c.l.b16 %v944
        %v1027 = vunpack.c.h.b16 %v944
        %v1028 = vunpack.c.l.b16 %v945
        %v1029 = vunpack.c.l.b16 %v946
        %v1030 = vunpack.c.h.b16 %v946
        %v1031 = vunpack.c.l.b16 %v947
        %v1032 = vunpack.c.l.b16 %v948
        %v1033 = vunpack.c.h.b16 %v948
        %v1034 = vunpack.c.l.b16 %v949
        %v1035 = vunpack.c.l.b16 %v950
        %v1036 = vunpack.c.h.b16 %v950
        %v1037 = vunpack.c.l.b16 %v951
        %v1038 = vunpack.c.l.b16 %v952
        %v1039 = vunpack.c.h.b16 %v952
        %v1040 = vunpack.c.l.b16 %v953
        %v1041 = vunpack.c.l.b16 %v954
        %v1042 = vunpack.c.h.b16 %v954
        %v1043 = vunpack.c.l.b16 %v955
        %v1044 = vunpack.c.l.b16 %v956
        %v1045 = vunpack.c.h.b16 %v956
        %v1046 = vunpack.c.l.b16 %v957
        %v1047 = vunpack.c.l.b16 %v958
        %v1048 = vunpack.c.h.b16 %v958
        %v1049 = vunpack.c.l.b16 %v959
        %v1050 = vunpack.c.l.b16 %v960
        %v1051 = vunpack.c.h.b16 %v960
        %v1052 = vunpack.c.l.b16 %v961
        %v1053 = vunpack.c.l.b16 %v962
        %v1054 = vunpack.c.h.b16 %v962
        %v1055 = vunpack.c.l.b16 %v963
        %v1056 = vunpack.c.l.b16 %v964
        %v1057 = vunpack.c.h.b16 %v964
        %v1058 = vunpack.c.l.b16 %v965
        %v1059 = vunpack.c.l.b16 %v966
        %v1060 = vunpack.c.h.b16 %v966
        %v1061 = vunpack.c.l.b16 %v967
        %v1062 = vunpack.c.l.b16 %v968
        %v1063 = vunpack.c.h.b16 %v968
        %v1064 = vunpack.c.l.b16 %v969
        %v1065 = vunpack.c.l.b16 %v970
        %v1066 = vunpack.c.h.b16 %v970
        %v1067 = vunpack.c.l.b16 %v971
        %v1068 = vunpack.c.l.b16 %v972
        %v1069 = vunpack.c.h.b16 %v972
        %v1070 = vunpack.c.l.b16 %v973
        %v1071 = vpack.c.b16 %v1026, %v1023
        %v1072 = vpack.c.b16 %v1027, %v1024
        %v1073 = vpack.c.b16 %v1028, %v1025
        %v1074 = vpack.c.b16 %v1032, %v1029
        %v1075 = vpack.c.b16 %v1033, %v1030
        %v1076 = vpack.c.b16 %v1034, %v1031
        %v1077 = vpack.c.b16 %v1038, %v1035
        %v1078 = vpack.c.b16 %v1039, %v1036
        %v1079 = vpack.c.b16 %v1040, %v1037
        %v1080 = vpack.c.b16 %v1044, %v1041
        %v1081 = vpack.c.b16 %v1045, %v1042
        %v1082 = vpack.c.b16 %v1046, %v1043
        %v1083 = vpack.c.b16 %v1050, %v1047
        %v1084 = vpack.c.b16 %v1051, %v1048
        %v1085 = vpack.c.b16 %v1052, %v1049
        %v1086 = vpack.c.b16 %v1056, %v1053
        %v1087 = vpack.c.b16 %v1057, %v1054
        %v1088 = vpack.c.b16 %v1058, %v1055
        %v1089 = vpack.c.b16 %v1062, %v1059
        %v1090 = vpack.c.b16 %v1063, %v1060
        %v1091 = vpack.c.b16 %v1064, %v1061
        %v1092 = vpack.c.b16 %v1068, %v1065
        %v1093 = vpack.c.b16 %v1069, %v1066
        %v1094 = vpack.c.b16 %v1070, %v1067
        %1119 = vmatprep.subr.bf16.mxu0 %v1072
        %1120 = vmatpush1.bf16.msra.mxu0 %v1071
        %1121 = vmatprep.subr.bf16.mxu0 %v1075
        %1122 = vmatpush1.bf16.msra.mxu0 %v1074
        %1123 = vmatprep.subr.bf16.mxu0 %v1078
        %1124 = vmatpush1.bf16.msra.mxu0 %v1077
        %1125 = vmatprep.subr.bf16.mxu0 %v1081
        %1126 = vmatpush1.bf16.msra.mxu0 %v1080
        %1127 = vmatprep.subr.bf16.mxu0 %v1084
        %1128 = vmatpush1.bf16.msra.mxu0 %v1083
        %1129 = vmatprep.subr.bf16.mxu0 %v1087
        %1130 = vmatpush1.bf16.msra.mxu0 %v1086
        %1131 = vmatprep.subr.bf16.mxu0 %v1090
        %1132 = vmatpush1.bf16.msra.mxu0 %v1089
        %1133 = vmatprep.subr.bf16.mxu0 %v1093
        %1134 = vmatpush1.bf16.msra.mxu0 %v1092
        %1135 = vmatprep.subr.bf16.mxu0 0
        %1136 = vmatpush1.bf16.msra.mxu0 0
        %1137 = vmatprep.subr.bf16.mxu0 0
        %1138 = vmatpush1.bf16.msra.mxu0 0
        %1139 = vmatprep.subr.bf16.mxu0 0
        %1140 = vmatpush1.bf16.msra.mxu0 0
        %1141 = vmatprep.subr.bf16.mxu0 0
        %1142 = vmatpush1.bf16.msra.mxu0 0
        %1143 = vmatprep.subr.bf16.mxu0 0
        %1144 = vmatpush1.bf16.msra.mxu0 0
        %1145 = vmatprep.subr.bf16.mxu0 0
        %1146 = vmatpush1.bf16.msra.mxu0 0
        %1147 = vmatprep.subr.bf16.mxu0 0
        %1148 = vmatpush1.bf16.msra.mxu0 0
        %1149 = vmatprep.subr.bf16.mxu0 0
        %1150 = vmatpush1.bf16.msra.mxu0 0
        %1151 = vmatprep.mubr.bf16.mxu0 0
        %1152 = vmatmul.mubr.bf16.gmra.mrb[0].mxu0 %v941
        %v1153 = vpop.f32.mrb[0].mxu0
        %v1154 = vadd.f32 %v979, %v1153
        %v1155 = vpop.f32.mrb[0].mxu0
        %v1156 = vadd.f32 %v983, %v1155
        %v1157 = vpop.f32.mrb[0].mxu0
        %v1158 = vadd.f32 %v979, %v1157
        %v1159 = vpop.f32.mrb[0].mxu0
        %v1160 = vadd.f32 %v983, %v1159
        %1161 = vdwg.mxu0
        %1162 = vmatprep.subr.bf16.mxu0 0
        %1163 = vmatpush1.bf16.msra.mxu0 %v1073
        %1164 = vmatprep.subr.bf16.mxu0 0
        %1165 = vmatpush1.bf16.msra.mxu0 %v1076
        %1166 = vmatprep.subr.bf16.mxu0 0
        %1167 = vmatpush1.bf16.msra.mxu0 %v1079
        %1168 = vmatprep.subr.bf16.mxu0 0
        %1169 = vmatpush1.bf16.msra.mxu0 %v1082
        %1170 = vmatprep.subr.bf16.mxu0 0
        %1171 = vmatpush1.bf16.msra.mxu0 %v1085
        %1172 = vmatprep.subr.bf16.mxu0 0
        %1173 = vmatpush1.bf16.msra.mxu0 %v1088
        %1174 = vmatprep.subr.bf16.mxu0 0
        %1175 = vmatpush1.bf16.msra.mxu0 %v1091
        %1176 = vmatprep.subr.bf16.mxu0 0
        %1177 = vmatpush1.bf16.msra.mxu0 %v1094
        %1178 = vmatprep.subr.bf16.mxu0 0
        %1179 = vmatpush1.bf16.msra.mxu0 0
        %1180 = vmatprep.subr.bf16.mxu0 0
        %1181 = vmatpush1.bf16.msra.mxu0 0
        %1182 = vmatprep.subr.bf16.mxu0 0
        %1183 = vmatpush1.bf16.msra.mxu0 0
        %1184 = vmatprep.subr.bf16.mxu0 0
        %1185 = vmatpush1.bf16.msra.mxu0 0
        %1186 = vmatprep.subr.bf16.mxu0 0
        %1187 = vmatpush1.bf16.msra.mxu0 0
        %1188 = vmatprep.subr.bf16.mxu0 0
        %1189 = vmatpush1.bf16.msra.mxu0 0
        %1190 = vmatprep.subr.bf16.mxu0 0
        %1191 = vmatpush1.bf16.msra.mxu0 0
        %1192 = vmatprep.subr.bf16.mxu0 0
        %1193 = vmatpush1.bf16.msra.mxu0 0
        %1194 = vmatprep.mubr.bf16.mxu0 0
        %1195 = vmatmul.mubr.bf16.gmra.mrb[0].mxu0 %v941
        %v1196 = vpop.f32.mrb[0].mxu0
        %v1197 = vadd.f32 %v987, %v1196
        %v1198 = vpop.f32.mrb[0].mxu0
        %v1199 = vpop.f32.mrb[0].mxu0
        %v1200 = vadd.f32 %v987, %v1199
        %v1201 = vpop.f32.mrb[0].mxu0
        %1202 = vdwg.mxu0
        %1205 = vrot.lane.b32.xlu0 %v1154, 64
        %v1206 = vpop.permute.xlu0 %1205
        %1207 = vrot.lane.b32.xlu0 %v1158, 64
        %v1208 = vpop.permute.xlu0 %1207
        %1213 = vrot.lane.b32.xlu0 %v1156, 64
        %v1214 = vpop.permute.xlu0 %1213
        %1215 = vrot.lane.b32.xlu0 %v1160, 64
        %v1216 = vpop.permute.xlu0 %1215
        %1221 = vrot.lane.b32.xlu0 %v1197, 64
        %v1222 = vpop.permute.xlu0 %1221
        %1223 = vrot.lane.b32.xlu0 %v1200, 64
        %v1224 = vpop.permute.xlu0 %1223
        %v1227 = vld [vmem:[%s1] sm:$0x3]
        %v1229 = vrot.slane %v1227, 6
        %vm1231 = vcmask 1041408
        %v1232 = vsel %vm1231, %v1227, %v1229
        %v1235 = vunpack.c.l.s4 1966171168
        %v1236 = vunpack.c.0.s8 %v1235
        %v1237 = vlaneseq
        %v1238 = vshrl.u32 %v1237, 7
        %v1239 = vsub.s32 %v1236, %v1238
        %v1240 = vrot.slane %v1232, %v1239
        %v1241 = vcombine.high %v1240, %v1240
        %v1243 = vunpack.c.l.s4 1966171168
        %v1244 = vunpack.c.0.s8 %v1243
        %v1245 = vlaneseq
        %v1246 = vshrl.u32 %v1245, 7
        %v1247 = vsub.s32 %v1244, %v1246
        %v1248 = vrot.slane %v1240, %v1247
        %v1250 = vunpack.c.l.s4 1966171168
        %v1251 = vunpack.c.0.s8 %v1250
        %v1252 = vlaneseq
        %v1253 = vshrl.u32 %v1252, 7
        %v1254 = vsub.s32 %v1251, %v1253
        %v1255 = vrot.slane %v1241, %v1254
        %v1256 = vcombine.high %v1248, %v1248
        %v1257 = vcombine.high %v1255, %v1255
        %v1258 = vpack.c.bf16 %v1154, %v1154
        %v1259 = vpack.c.bf16 %v1158, %v1158
        %v1260 = vpack.c.bf16 %v1206, %v1206
        %v1261 = vpack.c.bf16 %v1208, %v1208
        %v1262 = vpack.c.bf16 %v1156, %v1156
        %v1263 = vpack.c.bf16 %v1160, %v1160
        %v1264 = vpack.c.bf16 %v1214, %v1214
        %v1265 = vpack.c.bf16 %v1216, %v1216
        %vm1266 = vcmask 523264
        %v1268 = vsel %vm1266, %v1258, 0
        %v1271 = vsel %vm1266, %v1262, 0
        %1273 = vmatprep.subr.bf16.mxu0 0
        %1274 = vmatpush1.bf16.xpose.msra.mxu0 %v1271
        %1275 = vmatprep.subr.bf16.mxu0 0
        %1276 = vmatpush1.bf16.xpose.msra.mxu0 0
        %1277 = vmatprep.subr.bf16.mxu0 0
        %1278 = vmatpush1.bf16.xpose.msra.mxu0 0
        %1279 = vmatprep.subr.bf16.mxu0 0
        %1280 = vmatpush1.bf16.xpose.msra.mxu0 0
        %1281 = vmatprep.subr.bf16.mxu0 0
        %1282 = vmatpush1.bf16.xpose.msra.mxu0 0
        %1283 = vmatprep.subr.bf16.mxu0 0
        %1284 = vmatpush1.bf16.xpose.msra.mxu0 0
        %1285 = vmatprep.subr.bf16.mxu0 0
        %1286 = vmatpush1.bf16.xpose.msra.mxu0 0
        %1287 = vmatprep.subr.bf16.mxu0 0
        %1288 = vmatpush1.bf16.xpose.msra.mxu0 0
        %1289 = vmatprep.subr.bf16.mxu0 0
        %1290 = vmatpush1.bf16.xpose.msra.mxu0 0
        %1291 = vmatprep.subr.bf16.mxu0 0
        %1292 = vmatpush1.bf16.xpose.msra.mxu0 0
        %1293 = vmatprep.subr.bf16.mxu0 0
        %1294 = vmatpush1.bf16.xpose.msra.mxu0 0
        %1295 = vmatprep.subr.bf16.mxu0 0
        %1296 = vmatpush1.bf16.xpose.msra.mxu0 0
        %1297 = vmatprep.subr.bf16.mxu0 0
        %1298 = vmatpush1.bf16.xpose.msra.mxu0 0
        %1299 = vmatprep.subr.bf16.mxu0 0
        %1300 = vmatpush1.bf16.xpose.msra.mxu0 0
        %1301 = vmatprep.subr.bf16.mxu0 0
        %1302 = vmatpush1.bf16.xpose.msra.mxu0 0
        %1303 = vmatprep.subr.bf16.mxu0 0
        %1304 = vmatpush1.bf16.xpose.msra.mxu0 0
        %1305 = vmatprep.mubr.bf16.mxu0 0
        %1306 = vmatmul.mubr.bf16.gmra.mrb[0].mxu0 %v1268
        %v1307 = vpop.f32.mrb[0].mxu0
        %v1308 = vadd.f32 0.0, %v1307
        %v1309 = vpop.f32.mrb[0].mxu0
        %v1310 = vpop.f32.mrb[0].mxu0
        %v1311 = vpop.f32.mrb[0].mxu0
        %1312 = vdwg.mxu0
        %v1314 = vsel %vm1266, %v1259, 0
        %v1317 = vsel %vm1266, %v1263, 0
        %1319 = vmatprep.subr.bf16.mxu0 0
        %1320 = vmatpush1.bf16.xpose.msra.mxu0 %v1317
        %1321 = vmatprep.subr.bf16.mxu0 0
        %1322 = vmatpush1.bf16.xpose.msra.mxu0 0
        %1323 = vmatprep.subr.bf16.mxu0 0
        %1324 = vmatpush1.bf16.xpose.msra.mxu0 0
        %1325 = vmatprep.subr.bf16.mxu0 0
        %1326 = vmatpush1.bf16.xpose.msra.mxu0 0
        %1327 = vmatprep.subr.bf16.mxu0 0
        %1328 = vmatpush1.bf16.xpose.msra.mxu0 0
        %1329 = vmatprep.subr.bf16.mxu0 0
        %1330 = vmatpush1.bf16.xpose.msra.mxu0 0
        %1331 = vmatprep.subr.bf16.mxu0 0
        %1332 = vmatpush1.bf16.xpose.msra.mxu0 0
        %1333 = vmatprep.subr.bf16.mxu0 0
        %1334 = vmatpush1.bf16.xpose.msra.mxu0 0
        %1335 = vmatprep.subr.bf16.mxu0 0
        %1336 = vmatpush1.bf16.xpose.msra.mxu0 0
        %1337 = vmatprep.subr.bf16.mxu0 0
        %1338 = vmatpush1.bf16.xpose.msra.mxu0 0
        %1339 = vmatprep.subr.bf16.mxu0 0
        %1340 = vmatpush1.bf16.xpose.msra.mxu0 0
        %1341 = vmatprep.subr.bf16.mxu0 0
        %1342 = vmatpush1.bf16.xpose.msra.mxu0 0
        %1343 = vmatprep.subr.bf16.mxu0 0
        %1344 = vmatpush1.bf16.xpose.msra.mxu0 0
        %1345 = vmatprep.subr.bf16.mxu0 0
        %1346 = vmatpush1.bf16.xpose.msra.mxu0 0
        %1347 = vmatprep.subr.bf16.mxu0 0
        %1348 = vmatpush1.bf16.xpose.msra.mxu0 0
        %1349 = vmatprep.subr.bf16.mxu0 0
        %1350 = vmatpush1.bf16.xpose.msra.mxu0 0
        %1351 = vmatprep.mubr.bf16.mxu0 0
        %1352 = vmatmul.mubr.bf16.gmra.mrb[0].mxu0 %v1314
        %v1353 = vpop.f32.mrb[0].mxu0
        %v1354 = vadd.f32 0.0, %v1353
        %v1355 = vpop.f32.mrb[0].mxu0
        %v1356 = vpop.f32.mrb[0].mxu0
        %v1357 = vpop.f32.mrb[0].mxu0
        %1358 = vdwg.mxu0
        %v1360 = vsel %vm1266, %v1260, 0
        %v1363 = vsel %vm1266, %v1264, 0
        %1365 = vmatprep.subr.bf16.mxu0 0
        %1366 = vmatpush1.bf16.xpose.msra.mxu0 %v1363
        %1367 = vmatprep.subr.bf16.mxu0 0
        %1368 = vmatpush1.bf16.xpose.msra.mxu0 0
        %1369 = vmatprep.subr.bf16.mxu0 0
        %1370 = vmatpush1.bf16.xpose.msra.mxu0 0
        %1371 = vmatprep.subr.bf16.mxu0 0
        %1372 = vmatpush1.bf16.xpose.msra.mxu0 0
        %1373 = vmatprep.subr.bf16.mxu0 0
        %1374 = vmatpush1.bf16.xpose.msra.mxu0 0
        %1375 = vmatprep.subr.bf16.mxu0 0
        %1376 = vmatpush1.bf16.xpose.msra.mxu0 0
        %1377 = vmatprep.subr.bf16.mxu0 0
        %1378 = vmatpush1.bf16.xpose.msra.mxu0 0
        %1379 = vmatprep.subr.bf16.mxu0 0
        %1380 = vmatpush1.bf16.xpose.msra.mxu0 0
        %1381 = vmatprep.subr.bf16.mxu0 0
        %1382 = vmatpush1.bf16.xpose.msra.mxu0 0
        %1383 = vmatprep.subr.bf16.mxu0 0
        %1384 = vmatpush1.bf16.xpose.msra.mxu0 0
        %1385 = vmatprep.subr.bf16.mxu0 0
        %1386 = vmatpush1.bf16.xpose.msra.mxu0 0
        %1387 = vmatprep.subr.bf16.mxu0 0
        %1388 = vmatpush1.bf16.xpose.msra.mxu0 0
        %1389 = vmatprep.subr.bf16.mxu0 0
        %1390 = vmatpush1.bf16.xpose.msra.mxu0 0
        %1391 = vmatprep.subr.bf16.mxu0 0
        %1392 = vmatpush1.bf16.xpose.msra.mxu0 0
        %1393 = vmatprep.subr.bf16.mxu0 0
        %1394 = vmatpush1.bf16.xpose.msra.mxu0 0
        %1395 = vmatprep.subr.bf16.mxu0 0
        %1396 = vmatpush1.bf16.xpose.msra.mxu0 0
        %1397 = vmatprep.mubr.bf16.mxu0 0
        %1398 = vmatmul.mubr.bf16.gmra.mrb[0].mxu0 %v1360
        %v1399 = vpop.f32.mrb[0].mxu0
        %v1400 = vadd.f32 0.0, %v1399
        %v1401 = vpop.f32.mrb[0].mxu0
        %v1402 = vpop.f32.mrb[0].mxu0
        %v1403 = vpop.f32.mrb[0].mxu0
        %1404 = vdwg.mxu0
        %v1406 = vsel %vm1266, %v1261, 0
        %v1409 = vsel %vm1266, %v1265, 0
        %1411 = vmatprep.subr.bf16.mxu0 0
        %1412 = vmatpush1.bf16.xpose.msra.mxu0 %v1409
        %1413 = vmatprep.subr.bf16.mxu0 0
        %1414 = vmatpush1.bf16.xpose.msra.mxu0 0
        %1415 = vmatprep.subr.bf16.mxu0 0
        %1416 = vmatpush1.bf16.xpose.msra.mxu0 0
        %1417 = vmatprep.subr.bf16.mxu0 0
        %1418 = vmatpush1.bf16.xpose.msra.mxu0 0
        %1419 = vmatprep.subr.bf16.mxu0 0
        %1420 = vmatpush1.bf16.xpose.msra.mxu0 0
        %1421 = vmatprep.subr.bf16.mxu0 0
        %1422 = vmatpush1.bf16.xpose.msra.mxu0 0
        %1423 = vmatprep.subr.bf16.mxu0 0
        %1424 = vmatpush1.bf16.xpose.msra.mxu0 0
        %1425 = vmatprep.subr.bf16.mxu0 0
        %1426 = vmatpush1.bf16.xpose.msra.mxu0 0
        %1427 = vmatprep.subr.bf16.mxu0 0
        %1428 = vmatpush1.bf16.xpose.msra.mxu0 0
        %1429 = vmatprep.subr.bf16.mxu0 0
        %1430 = vmatpush1.bf16.xpose.msra.mxu0 0
        %1431 = vmatprep.subr.bf16.mxu0 0
        %1432 = vmatpush1.bf16.xpose.msra.mxu0 0
        %1433 = vmatprep.subr.bf16.mxu0 0
        %1434 = vmatpush1.bf16.xpose.msra.mxu0 0
        %1435 = vmatprep.subr.bf16.mxu0 0
        %1436 = vmatpush1.bf16.xpose.msra.mxu0 0
        %1437 = vmatprep.subr.bf16.mxu0 0
        %1438 = vmatpush1.bf16.xpose.msra.mxu0 0
        %1439 = vmatprep.subr.bf16.mxu0 0
        %1440 = vmatpush1.bf16.xpose.msra.mxu0 0
        %1441 = vmatprep.subr.bf16.mxu0 0
        %1442 = vmatpush1.bf16.xpose.msra.mxu0 0
        %1443 = vmatprep.mubr.bf16.mxu0 0
        %1444 = vmatmul.mubr.bf16.gmra.mrb[0].mxu0 %v1406
        %v1445 = vpop.f32.mrb[0].mxu0
        %v1446 = vadd.f32 0.0, %v1445
        %v1447 = vpop.f32.mrb[0].mxu0
        %v1448 = vpop.f32.mrb[0].mxu0
        %v1449 = vpop.f32.mrb[0].mxu0
        %1450 = vdwg.mxu0
        %v1451 = vmul.f32 %v1308, 0.125
        %v1452 = vmul.f32 %v1354, 0.125
        %v1453 = vmul.f32 %v1400, 0.125
        %v1454 = vmul.f32 %v1446, 0.125
        %v1455 = vlaneseq
        %v1456 = vshrl.u32 %v1455, 7
        %v1457 = vsub.s32 0, %v1456
        %v1458 = vrot.slane %v1248, %v1457
        %v1459 = vlaneseq
        %v1460 = vshrl.u32 %v1459, 7
        %v1461 = vsub.s32 0, %v1460
        %v1462 = vrot.slane %v1255, %v1461
        %v1463 = vlaneseq
        %v1464 = vshrl.u32 %v1463, 7
        %v1465 = vsub.s32 0, %v1464
        %v1466 = vrot.slane %v1256, %v1465
        %v1467 = vlaneseq
        %v1468 = vshrl.u32 %v1467, 7
        %v1469 = vsub.s32 0, %v1468
        %v1470 = vrot.slane %v1257, %v1469
        %v1475 = vadd.f32 %v1451, %v1458
        %v1476 = vadd.f32 %v1452, %v1462
        %v1477 = vadd.f32 %v1453, %v1466
        %v1478 = vadd.f32 %v1454, %v1470
        %vm1479 = vcmask 64512
        %v1480 = vsel %vm1479, %v1475, -inf
        %1481 = vmax.xlane.f32.xlu0 %v1480
        %v1482 = vpop.xlane.xlu0 %1481
        %v1483 = vsel %vm1479, %v1476, -inf
        %1484 = vmax.xlane.f32.xlu0 %v1483
        %v1485 = vpop.xlane.xlu0 %1484
        %v1486 = vsel %vm1479, %v1477, -inf
        %1487 = vmax.xlane.f32.xlu0 %v1486
        %v1488 = vpop.xlane.xlu0 %1487
        %v1489 = vsel %vm1479, %v1478, -inf
        %1490 = vmax.xlane.f32.xlu0 %v1489
        %v1491 = vpop.xlane.xlu0 %1490
        %v1492 = vsub.f32 %v1475, %v1482
        %v1493 = vsub.f32 %v1476, %v1485
        %v1494 = vsub.f32 %v1477, %v1488
        %v1495 = vsub.f32 %v1478, %v1491
        %v1496 = vmul.f32 %v1492, 1.442695
        %v1497 = vpow.pop %v1496
        %v1498 = vmul.f32 %v1493, 1.442695
        %v1499 = vpow.pop %v1498
        %v1500 = vmul.f32 %v1494, 1.442695
        %v1501 = vpow.pop %v1500
        %v1502 = vmul.f32 %v1495, 1.442695
        %v1503 = vpow.pop %v1502
        %v1504 = vsel %vm1479, %v1497, 0.0
        %1505 = vadd.xlane.f32.xlu0 %v1504
        %v1506 = vpop.xlane.xlu0 %1505
        %v1507 = vsel %vm1479, %v1499, 0.0
        %1508 = vadd.xlane.f32.xlu0 %v1507
        %v1509 = vpop.xlane.xlu0 %1508
        %v1510 = vsel %vm1479, %v1501, 0.0
        %1511 = vadd.xlane.f32.xlu0 %v1510
        %v1512 = vpop.xlane.xlu0 %1511
        %v1513 = vsel %vm1479, %v1503, 0.0
        %1514 = vadd.xlane.f32.xlu0 %v1513
        %v1515 = vpop.xlane.xlu0 %1514
        %v1516 = vrcp.pop %v1506
        %v1517 = vrcp.pop %v1509
        %v1518 = vrcp.pop %v1512
        %v1519 = vrcp.pop %v1515
        %v1520 = vmul.f32 %v1497, %v1516
        %v1521 = vmul.f32 %v1499, %v1517
        %v1522 = vmul.f32 %v1501, %v1518
        %v1523 = vmul.f32 %v1503, %v1519
        %v1524 = vpack.c.bf16 %v1520, %v1520
        %v1525 = vpack.c.bf16 %v1521, %v1521
        %v1526 = vpack.c.bf16 %v1522, %v1522
        %v1527 = vpack.c.bf16 %v1523, %v1523
        %v1528 = vpack.c.bf16 %v1197, %v1197
        %v1529 = vpack.c.bf16 %v1200, %v1200
        %v1530 = vpack.c.bf16 %v1222, %v1222
        %v1531 = vpack.c.bf16 %v1224, %v1224
        %v1533 = vsel %vm1479, %v1524, 0
        %vm1535 = vcmask 1043456
        %v1537 = vsel %vm1535, %v1528, 0
        %1539 = vmatprep.subr.bf16.mxu0 0
        %1540 = vmatpush1.bf16.msra.mxu0 %v1537
        %1541 = vmatprep.subr.bf16.mxu0 0
        %1542 = vmatpush1.bf16.msra.mxu0 0
        %1543 = vmatprep.subr.bf16.mxu0 0
        %1544 = vmatpush1.bf16.msra.mxu0 0
        %1545 = vmatprep.subr.bf16.mxu0 0
        %1546 = vmatpush1.bf16.msra.mxu0 0
        %1547 = vmatprep.subr.bf16.mxu0 0
        %1548 = vmatpush1.bf16.msra.mxu0 0
        %1549 = vmatprep.subr.bf16.mxu0 0
        %1550 = vmatpush1.bf16.msra.mxu0 0
        %1551 = vmatprep.subr.bf16.mxu0 0
        %1552 = vmatpush1.bf16.msra.mxu0 0
        %1553 = vmatprep.subr.bf16.mxu0 0
        %1554 = vmatpush1.bf16.msra.mxu0 0
        %1555 = vmatprep.subr.bf16.mxu0 0
        %1556 = vmatpush1.bf16.msra.mxu0 0
        %1557 = vmatprep.subr.bf16.mxu0 0
        %1558 = vmatpush1.bf16.msra.mxu0 0
        %1559 = vmatprep.subr.bf16.mxu0 0
        %1560 = vmatpush1.bf16.msra.mxu0 0
        %1561 = vmatprep.subr.bf16.mxu0 0
        %1562 = vmatpush1.bf16.msra.mxu0 0
        %1563 = vmatprep.subr.bf16.mxu0 0
        %1564 = vmatpush1.bf16.msra.mxu0 0
        %1565 = vmatprep.subr.bf16.mxu0 0
        %1566 = vmatpush1.bf16.msra.mxu0 0
        %1567 = vmatprep.subr.bf16.mxu0 0
        %1568 = vmatpush1.bf16.msra.mxu0 0
        %1569 = vmatprep.subr.bf16.mxu0 0
        %1570 = vmatpush1.bf16.msra.mxu0 0
        %1571 = vmatprep.mubr.bf16.mxu0 0
        %1572 = vmatmul.mubr.bf16.gmra.mrb[0].mxu0 %v1533
        %v1573 = vpop.f32.mrb[0].mxu0
        %v1574 = vadd.f32 0.0, %v1573
        %v1575 = vpop.f32.mrb[0].mxu0
        %v1576 = vpop.f32.mrb[0].mxu0
        %v1577 = vpop.f32.mrb[0].mxu0
        %1578 = vdwg.mxu0
        %v1580 = vsel %vm1479, %v1525, 0
        %v1583 = vsel %vm1535, %v1529, 0
        %1585 = vmatprep.subr.bf16.mxu0 0
        %1586 = vmatpush1.bf16.msra.mxu0 %v1583
        %1587 = vmatprep.subr.bf16.mxu0 0
        %1588 = vmatpush1.bf16.msra.mxu0 0
        %1589 = vmatprep.subr.bf16.mxu0 0
        %1590 = vmatpush1.bf16.msra.mxu0 0
        %1591 = vmatprep.subr.bf16.mxu0 0
        %1592 = vmatpush1.bf16.msra.mxu0 0
        %1593 = vmatprep.subr.bf16.mxu0 0
        %1594 = vmatpush1.bf16.msra.mxu0 0
        %1595 = vmatprep.subr.bf16.mxu0 0
        %1596 = vmatpush1.bf16.msra.mxu0 0
        %1597 = vmatprep.subr.bf16.mxu0 0
        %1598 = vmatpush1.bf16.msra.mxu0 0
        %1599 = vmatprep.subr.bf16.mxu0 0
        %1600 = vmatpush1.bf16.msra.mxu0 0
        %1601 = vmatprep.subr.bf16.mxu0 0
        %1602 = vmatpush1.bf16.msra.mxu0 0
        %1603 = vmatprep.subr.bf16.mxu0 0
        %1604 = vmatpush1.bf16.msra.mxu0 0
        %1605 = vmatprep.subr.bf16.mxu0 0
        %1606 = vmatpush1.bf16.msra.mxu0 0
        %1607 = vmatprep.subr.bf16.mxu0 0
        %1608 = vmatpush1.bf16.msra.mxu0 0
        %1609 = vmatprep.subr.bf16.mxu0 0
        %1610 = vmatpush1.bf16.msra.mxu0 0
        %1611 = vmatprep.subr.bf16.mxu0 0
        %1612 = vmatpush1.bf16.msra.mxu0 0
        %1613 = vmatprep.subr.bf16.mxu0 0
        %1614 = vmatpush1.bf16.msra.mxu0 0
        %1615 = vmatprep.subr.bf16.mxu0 0
        %1616 = vmatpush1.bf16.msra.mxu0 0
        %1617 = vmatprep.mubr.bf16.mxu0 0
        %1618 = vmatmul.mubr.bf16.gmra.mrb[0].mxu0 %v1580
        %v1619 = vpop.f32.mrb[0].mxu0
        %v1620 = vadd.f32 0.0, %v1619
        %v1621 = vpop.f32.mrb[0].mxu0
        %v1622 = vpop.f32.mrb[0].mxu0
        %v1623 = vpop.f32.mrb[0].mxu0
        %1624 = vdwg.mxu0
        %v1626 = vsel %vm1479, %v1526, 0
        %v1629 = vsel %vm1535, %v1530, 0
        %1631 = vmatprep.subr.bf16.mxu0 0
        %1632 = vmatpush1.bf16.msra.mxu0 %v1629
        %1633 = vmatprep.subr.bf16.mxu0 0
        %1634 = vmatpush1.bf16.msra.mxu0 0
        %1635 = vmatprep.subr.bf16.mxu0 0
        %1636 = vmatpush1.bf16.msra.mxu0 0
        %1637 = vmatprep.subr.bf16.mxu0 0
        %1638 = vmatpush1.bf16.msra.mxu0 0
        %1639 = vmatprep.subr.bf16.mxu0 0
        %1640 = vmatpush1.bf16.msra.mxu0 0
        %1641 = vmatprep.subr.bf16.mxu0 0
        %1642 = vmatpush1.bf16.msra.mxu0 0
        %1643 = vmatprep.subr.bf16.mxu0 0
        %1644 = vmatpush1.bf16.msra.mxu0 0
        %1645 = vmatprep.subr.bf16.mxu0 0
        %1646 = vmatpush1.bf16.msra.mxu0 0
        %1647 = vmatprep.subr.bf16.mxu0 0
        %1648 = vmatpush1.bf16.msra.mxu0 0
        %1649 = vmatprep.subr.bf16.mxu0 0
        %1650 = vmatpush1.bf16.msra.mxu0 0
        %1651 = vmatprep.subr.bf16.mxu0 0
        %1652 = vmatpush1.bf16.msra.mxu0 0
        %1653 = vmatprep.subr.bf16.mxu0 0
        %1654 = vmatpush1.bf16.msra.mxu0 0
        %1655 = vmatprep.subr.bf16.mxu0 0
        %1656 = vmatpush1.bf16.msra.mxu0 0
        %1657 = vmatprep.subr.bf16.mxu0 0
        %1658 = vmatpush1.bf16.msra.mxu0 0
        %1659 = vmatprep.subr.bf16.mxu0 0
        %1660 = vmatpush1.bf16.msra.mxu0 0
        %1661 = vmatprep.subr.bf16.mxu0 0
        %1662 = vmatpush1.bf16.msra.mxu0 0
        %1663 = vmatprep.mubr.bf16.mxu0 0
        %1664 = vmatmul.mubr.bf16.gmra.mrb[0].mxu0 %v1626
        %v1665 = vpop.f32.mrb[0].mxu0
        %v1666 = vadd.f32 0.0, %v1665
        %v1667 = vpop.f32.mrb[0].mxu0
        %v1668 = vpop.f32.mrb[0].mxu0
        %v1669 = vpop.f32.mrb[0].mxu0
        %1670 = vdwg.mxu0
        %v1672 = vsel %vm1479, %v1527, 0
        %v1675 = vsel %vm1535, %v1531, 0
        %1677 = vmatprep.subr.bf16.mxu0 0
        %1678 = vmatpush1.bf16.msra.mxu0 %v1675
        %1679 = vmatprep.subr.bf16.mxu0 0
        %1680 = vmatpush1.bf16.msra.mxu0 0
        %1681 = vmatprep.subr.bf16.mxu0 0
        %1682 = vmatpush1.bf16.msra.mxu0 0
        %1683 = vmatprep.subr.bf16.mxu0 0
        %1684 = vmatpush1.bf16.msra.mxu0 0
        %1685 = vmatprep.subr.bf16.mxu0 0
        %1686 = vmatpush1.bf16.msra.mxu0 0
        %1687 = vmatprep.subr.bf16.mxu0 0
        %1688 = vmatpush1.bf16.msra.mxu0 0
        %1689 = vmatprep.subr.bf16.mxu0 0
        %1690 = vmatpush1.bf16.msra.mxu0 0
        %1691 = vmatprep.subr.bf16.mxu0 0
        %1692 = vmatpush1.bf16.msra.mxu0 0
        %1693 = vmatprep.subr.bf16.mxu0 0
        %1694 = vmatpush1.bf16.msra.mxu0 0
        %1695 = vmatprep.subr.bf16.mxu0 0
        %1696 = vmatpush1.bf16.msra.mxu0 0
        %1697 = vmatprep.subr.bf16.mxu0 0
        %1698 = vmatpush1.bf16.msra.mxu0 0
        %1699 = vmatprep.subr.bf16.mxu0 0
        %1700 = vmatpush1.bf16.msra.mxu0 0
        %1701 = vmatprep.subr.bf16.mxu0 0
        %1702 = vmatpush1.bf16.msra.mxu0 0
        %1703 = vmatprep.subr.bf16.mxu0 0
        %1704 = vmatpush1.bf16.msra.mxu0 0
        %1705 = vmatprep.subr.bf16.mxu0 0
        %1706 = vmatpush1.bf16.msra.mxu0 0
        %1707 = vmatprep.subr.bf16.mxu0 0
        %1708 = vmatpush1.bf16.msra.mxu0 0
        %1709 = vmatprep.mubr.bf16.mxu0 0
        %1710 = vmatmul.mubr.bf16.gmra.mrb[0].mxu0 %v1672
        %v1711 = vpop.f32.mrb[0].mxu0
        %v1712 = vadd.f32 0.0, %v1711
        %v1713 = vpop.f32.mrb[0].mxu0
        %v1714 = vpop.f32.mrb[0].mxu0
        %v1715 = vpop.f32.mrb[0].mxu0
        %1716 = vdwg.mxu0
        %1719 = vrot.lane.b32.xlu0 %v1666, 64
        %v1720 = vpop.permute.xlu0 %1719
        %1721 = vrot.lane.b32.xlu0 %v1712, 64
        %v1722 = vpop.permute.xlu0 %1721
        %v1725 = vsel %vm1266, %v1574, %v1720
        %v1726 = vsel %vm1266, %v1620, %v1722
        %v1727 = vpack.c.bf16 %v1726, %v1725
        %v1728 = vld [vmem:[%s741] sm:$0xf]
        %v1729 = vld [vmem:[%s741 + $0x4] sm:$0xf]
        %v1730 = vld [vmem:[%s741 + $0x8] sm:$0xf]
        %v1731 = vld [vmem:[%s741 + $0xc] sm:$0xf]
        %v1732 = vld [vmem:[%s741 + $0x10] sm:$0xf]
        %v1733 = vld [vmem:[%s741 + $0x14] sm:$0xf]
        %v1734 = vld [vmem:[%s741 + $0x18] sm:$0xf]
        %v1735 = vld [vmem:[%s741 + $0x1c] sm:$0xf]
        %v1736 = vld [vmem:[%s741 + $0x20] sm:$0xf]
        %v1737 = vld [vmem:[%s741 + $0x24] sm:$0xf]
        %v1738 = vld [vmem:[%s741 + $0x28] sm:$0xf]
        %v1739 = vld [vmem:[%s741 + $0x2c] sm:$0xf]
        %v1740 = vld [vmem:[%s741 + $0x30] sm:$0xf]
        %v1741 = vld [vmem:[%s741 + $0x34] sm:$0xf]
        %v1742 = vld [vmem:[%s741 + $0x38] sm:$0xf]
        %v1743 = vld [vmem:[%s741 + $0x3c] sm:$0xf]
        %v1744 = vld [vmem:[%s869] sm:$0x1]
        %v1746 = vlaneseq
        %v1747 = vshrl.u32 %v1746, 7
        %v1748 = vsub.s32 0, %v1747
        %v1749 = vrot.slane %v1744, %v1748
        %v1767 = vunpack.c.l.b16 %v1728
        %v1768 = vunpack.c.l.b16 %v1729
        %v1769 = vunpack.c.l.b16 %v1730
        %v1770 = vunpack.c.l.b16 %v1731
        %v1771 = vunpack.c.l.b16 %v1732
        %v1772 = vunpack.c.l.b16 %v1733
        %v1773 = vunpack.c.l.b16 %v1734
        %v1774 = vunpack.c.l.b16 %v1735
        %v1775 = vunpack.c.l.b16 %v1736
        %v1776 = vunpack.c.l.b16 %v1737
        %v1777 = vunpack.c.l.b16 %v1738
        %v1778 = vunpack.c.l.b16 %v1739
        %v1779 = vunpack.c.l.b16 %v1740
        %v1780 = vunpack.c.l.b16 %v1741
        %v1781 = vunpack.c.l.b16 %v1742
        %v1782 = vunpack.c.l.b16 %v1743
        %v1783 = vpack.c.b16 %v1768, %v1767
        %v1784 = vpack.c.b16 %v1770, %v1769
        %v1785 = vpack.c.b16 %v1772, %v1771
        %v1786 = vpack.c.b16 %v1774, %v1773
        %v1787 = vpack.c.b16 %v1776, %v1775
        %v1788 = vpack.c.b16 %v1778, %v1777
        %v1789 = vpack.c.b16 %v1780, %v1779
        %v1790 = vpack.c.b16 %v1782, %v1781
        %1799 = vmatprep.subr.bf16.mxu0 0
        %1800 = vmatpush1.bf16.msra.mxu0 %v1783
        %1801 = vmatprep.subr.bf16.mxu0 0
        %1802 = vmatpush1.bf16.msra.mxu0 %v1784
        %1803 = vmatprep.subr.bf16.mxu0 0
        %1804 = vmatpush1.bf16.msra.mxu0 %v1785
        %1805 = vmatprep.subr.bf16.mxu0 0
        %1806 = vmatpush1.bf16.msra.mxu0 %v1786
        %1807 = vmatprep.subr.bf16.mxu0 0
        %1808 = vmatpush1.bf16.msra.mxu0 %v1787
        %1809 = vmatprep.subr.bf16.mxu0 0
        %1810 = vmatpush1.bf16.msra.mxu0 %v1788
        %1811 = vmatprep.subr.bf16.mxu0 0
        %1812 = vmatpush1.bf16.msra.mxu0 %v1789
        %1813 = vmatprep.subr.bf16.mxu0 0
        %1814 = vmatpush1.bf16.msra.mxu0 %v1790
        %1815 = vmatprep.subr.bf16.mxu0 0
        %1816 = vmatpush1.bf16.msra.mxu0 0
        %1817 = vmatprep.subr.bf16.mxu0 0
        %1818 = vmatpush1.bf16.msra.mxu0 0
        %1819 = vmatprep.subr.bf16.mxu0 0
        %1820 = vmatpush1.bf16.msra.mxu0 0
        %1821 = vmatprep.subr.bf16.mxu0 0
        %1822 = vmatpush1.bf16.msra.mxu0 0
        %1823 = vmatprep.subr.bf16.mxu0 0
        %1824 = vmatpush1.bf16.msra.mxu0 0
        %1825 = vmatprep.subr.bf16.mxu0 0
        %1826 = vmatpush1.bf16.msra.mxu0 0
        %1827 = vmatprep.subr.bf16.mxu0 0
        %1828 = vmatpush1.bf16.msra.mxu0 0
        %1829 = vmatprep.subr.bf16.mxu0 0
        %1830 = vmatpush1.bf16.msra.mxu0 0
        %1831 = vmatprep.mubr.bf16.mxu0 0
        %1832 = vmatmul.mubr.bf16.gmra.mrb[0].mxu0 %v1727
        %v1833 = vpop.f32.mrb[0].mxu0
        %v1834 = vadd.f32 %v1749, %v1833
        %v1835 = vpop.f32.mrb[0].mxu0
        %v1836 = vpop.f32.mrb[0].mxu0
        %v1837 = vadd.f32 %v1749, %v1836
        %v1838 = vpop.f32.mrb[0].mxu0
        %1839 = vdwg.mxu0
        %v1840 = vadd.f32 %v1834, %v939
        %v1841 = vadd.f32 %v1837, %v940
        %v1842 = vld [vmem:[%s872] sm:$0x1]
        %v1843 = vld [vmem:[%s875] sm:$0x1]
        %1844 = vadd.xlane.f32.xlu0 %v1840
        %v1845 = vpop.xlane.xlu0 %1844
        %1846 = vadd.xlane.f32.xlu0 %v1841
        %v1847 = vpop.xlane.xlu0 %1846
        %v1848 = vrcp.pop 128.0
        %v1849 = vmul.f32 %v1845, %v1848
        %v1850 = vmul.f32 %v1847, %v1848
        %v1851 = vsub.f32 %v1840, %v1849
        %v1852 = vsub.f32 %v1841, %v1850
        %v1853 = vmul.f32 %v1851, %v1851
        %v1854 = vmul.f32 %v1852, %v1852
        %1855 = vadd.xlane.f32.xlu0 %v1853
        %v1856 = vpop.xlane.xlu0 %1855
        %1857 = vadd.xlane.f32.xlu0 %v1854
        %v1858 = vpop.xlane.xlu0 %1857
        %v1859 = vmul.f32 %v1856, %v1848
        %v1860 = vmul.f32 %v1858, %v1848
        %v1861 = vadd.f32 %v1859, 1e-05
        %v1862 = vadd.f32 %v1860, 1e-05
        %v1863 = vrsqrt.pop %v1861
        %v1864 = vrsqrt.pop %v1862
        %v1865 = vmul.f32 %v1851, %v1863
        %v1866 = vmul.f32 %v1852, %v1864
        %v1868 = vlaneseq
        %v1869 = vshrl.u32 %v1868, 7
        %v1870 = vsub.s32 0, %v1869
        %v1871 = vrot.slane %v1842, %v1870
        %v1873 = vmul.f32 %v1865, %v1871
        %v1874 = vmul.f32 %v1866, %v1871
        %v1876 = vlaneseq
        %v1877 = vshrl.u32 %v1876, 7
        %v1878 = vsub.s32 0, %v1877
        %v1879 = vrot.slane %v1843, %v1878
        %v1881 = vadd.f32 %v1873, %v1879
        %v1882 = vadd.f32 %v1874, %v1879
        %v1883 = vpack.c.bf16 %v1882, %v1881
        %v1884 = vld [vmem:[%s750] sm:$0xff]
        %v1885 = vld [vmem:[%s750 + $0x8] sm:$0xff]
        %v1886 = vld [vmem:[%s750 + $0x10] sm:$0xff]
        %v1887 = vld [vmem:[%s750 + $0x18] sm:$0xff]
        %v1888 = vld [vmem:[%s750 + $0x20] sm:$0xff]
        %v1889 = vld [vmem:[%s750 + $0x28] sm:$0xff]
        %v1890 = vld [vmem:[%s750 + $0x30] sm:$0xff]
        %v1891 = vld [vmem:[%s750 + $0x38] sm:$0xff]
        %v1892 = vld [vmem:[%s750 + $0x40] sm:$0xff]
        %v1893 = vld [vmem:[%s750 + $0x48] sm:$0xff]
        %v1894 = vld [vmem:[%s750 + $0x50] sm:$0xff]
        %v1895 = vld [vmem:[%s750 + $0x58] sm:$0xff]
        %v1896 = vld [vmem:[%s750 + $0x60] sm:$0xff]
        %v1897 = vld [vmem:[%s750 + $0x68] sm:$0xff]
        %v1898 = vld [vmem:[%s750 + $0x70] sm:$0xff]
        %v1899 = vld [vmem:[%s750 + $0x78] sm:$0xff]
        %v1900 = vld [vmem:[%s879] sm:$0x3]
        %v1902 = vlaneseq
        %v1903 = vshrl.u32 %v1902, 7
        %v1904 = vsub.s32 0, %v1903
        %v1905 = vrot.slane %v1900, %v1904
        %v1906 = vlaneseq
        %v1907 = vshrl.u32 %v1906, 7
        %v1908 = vsub.s32 1, %v1907
        %v1909 = vrot.slane %v1900, %v1908
        %v1928 = vunpack.c.l.b16 %v1884
        %v1929 = vunpack.c.h.b16 %v1884
        %v1930 = vunpack.c.l.b16 %v1885
        %v1931 = vunpack.c.h.b16 %v1885
        %v1932 = vunpack.c.l.b16 %v1886
        %v1933 = vunpack.c.h.b16 %v1886
        %v1934 = vunpack.c.l.b16 %v1887
        %v1935 = vunpack.c.h.b16 %v1887
        %v1936 = vunpack.c.l.b16 %v1888
        %v1937 = vunpack.c.h.b16 %v1888
        %v1938 = vunpack.c.l.b16 %v1889
        %v1939 = vunpack.c.h.b16 %v1889
        %v1940 = vunpack.c.l.b16 %v1890
        %v1941 = vunpack.c.h.b16 %v1890
        %v1942 = vunpack.c.l.b16 %v1891
        %v1943 = vunpack.c.h.b16 %v1891
        %v1944 = vunpack.c.l.b16 %v1892
        %v1945 = vunpack.c.h.b16 %v1892
        %v1946 = vunpack.c.l.b16 %v1893
        %v1947 = vunpack.c.h.b16 %v1893
        %v1948 = vunpack.c.l.b16 %v1894
        %v1949 = vunpack.c.h.b16 %v1894
        %v1950 = vunpack.c.l.b16 %v1895
        %v1951 = vunpack.c.h.b16 %v1895
        %v1952 = vunpack.c.l.b16 %v1896
        %v1953 = vunpack.c.h.b16 %v1896
        %v1954 = vunpack.c.l.b16 %v1897
        %v1955 = vunpack.c.h.b16 %v1897
        %v1956 = vunpack.c.l.b16 %v1898
        %v1957 = vunpack.c.h.b16 %v1898
        %v1958 = vunpack.c.l.b16 %v1899
        %v1959 = vunpack.c.h.b16 %v1899
        %v1960 = vpack.c.b16 %v1930, %v1928
        %v1961 = vpack.c.b16 %v1931, %v1929
        %v1962 = vpack.c.b16 %v1934, %v1932
        %v1963 = vpack.c.b16 %v1935, %v1933
        %v1964 = vpack.c.b16 %v1938, %v1936
        %v1965 = vpack.c.b16 %v1939, %v1937
        %v1966 = vpack.c.b16 %v1942, %v1940
        %v1967 = vpack.c.b16 %v1943, %v1941
        %v1968 = vpack.c.b16 %v1946, %v1944
        %v1969 = vpack.c.b16 %v1947, %v1945
        %v1970 = vpack.c.b16 %v1950, %v1948
        %v1971 = vpack.c.b16 %v1951, %v1949
        %v1972 = vpack.c.b16 %v1954, %v1952
        %v1973 = vpack.c.b16 %v1955, %v1953
        %v1974 = vpack.c.b16 %v1958, %v1956
        %v1975 = vpack.c.b16 %v1959, %v1957
        %1992 = vmatprep.subr.bf16.mxu0 %v1961
        %1993 = vmatpush1.bf16.msra.mxu0 %v1960
        %1994 = vmatprep.subr.bf16.mxu0 %v1963
        %1995 = vmatpush1.bf16.msra.mxu0 %v1962
        %1996 = vmatprep.subr.bf16.mxu0 %v1965
        %1997 = vmatpush1.bf16.msra.mxu0 %v1964
        %1998 = vmatprep.subr.bf16.mxu0 %v1967
        %1999 = vmatpush1.bf16.msra.mxu0 %v1966
        %2000 = vmatprep.subr.bf16.mxu0 %v1969
        %2001 = vmatpush1.bf16.msra.mxu0 %v1968
        %2002 = vmatprep.subr.bf16.mxu0 %v1971
        %2003 = vmatpush1.bf16.msra.mxu0 %v1970
        %2004 = vmatprep.subr.bf16.mxu0 %v1973
        %2005 = vmatpush1.bf16.msra.mxu0 %v1972
        %2006 = vmatprep.subr.bf16.mxu0 %v1975
        %2007 = vmatpush1.bf16.msra.mxu0 %v1974
        %2008 = vmatprep.subr.bf16.mxu0 0
        %2009 = vmatpush1.bf16.msra.mxu0 0
        %2010 = vmatprep.subr.bf16.mxu0 0
        %2011 = vmatpush1.bf16.msra.mxu0 0
        %2012 = vmatprep.subr.bf16.mxu0 0
        %2013 = vmatpush1.bf16.msra.mxu0 0
        %2014 = vmatprep.subr.bf16.mxu0 0
        %2015 = vmatpush1.bf16.msra.mxu0 0
        %2016 = vmatprep.subr.bf16.mxu0 0
        %2017 = vmatpush1.bf16.msra.mxu0 0
        %2018 = vmatprep.subr.bf16.mxu0 0
        %2019 = vmatpush1.bf16.msra.mxu0 0
        %2020 = vmatprep.subr.bf16.mxu0 0
        %2021 = vmatpush1.bf16.msra.mxu0 0
        %2022 = vmatprep.subr.bf16.mxu0 0
        %2023 = vmatpush1.bf16.msra.mxu0 0
        %2024 = vmatprep.mubr.bf16.mxu0 0
        %2025 = vmatmul.mubr.bf16.gmra.mrb[0].mxu0 %v1883
        %v2026 = vpop.f32.mrb[0].mxu0
        %v2027 = vadd.f32 %v1905, %v2026
        %v2028 = vpop.f32.mrb[0].mxu0
        %v2029 = vadd.f32 %v1909, %v2028
        %v2030 = vpop.f32.mrb[0].mxu0
        %v2031 = vadd.f32 %v1905, %v2030
        %v2032 = vpop.f32.mrb[0].mxu0
        %v2033 = vadd.f32 %v1909, %v2032
        %2034 = vdwg.mxu0
        %v2035 = vmul.f32 %v2027, %v2027
        %v2036 = vmul.f32 %v2029, %v2029
        %v2037 = vmul.f32 %v2031, %v2031
        %v2038 = vmul.f32 %v2033, %v2033
        %v2039 = vmul.f32 %v2027, %v2035
        %v2040 = vmul.f32 %v2029, %v2036
        %v2041 = vmul.f32 %v2031, %v2037
        %v2042 = vmul.f32 %v2033, %v2038
        %v2043 = vmul.f32 %v2039, 0.044715
        %v2044 = vmul.f32 %v2040, 0.044715
        %v2045 = vmul.f32 %v2041, 0.044715
        %v2046 = vmul.f32 %v2042, 0.044715
        %v2047 = vadd.f32 %v2027, %v2043
        %v2048 = vadd.f32 %v2029, %v2044
        %v2049 = vadd.f32 %v2031, %v2045
        %v2050 = vadd.f32 %v2033, %v2046
        %v2051 = vmul.f32 %v2047, 0.7978846
        %v2052 = vmul.f32 %v2048, 0.7978846
        %v2053 = vmul.f32 %v2049, 0.7978846
        %v2054 = vmul.f32 %v2050, 0.7978846
        %v2055 = vtanh.pop %v2051
        %v2056 = vtanh.pop %v2052
        %v2057 = vtanh.pop %v2053
        %v2058 = vtanh.pop %v2054
        %v2059 = vadd.f32 %v2055, 1.0
        %v2060 = vadd.f32 %v2056, 1.0
        %v2061 = vadd.f32 %v2057, 1.0
        %v2062 = vadd.f32 %v2058, 1.0
        %v2063 = vmul.f32 %v2059, 0.5
        %v2064 = vmul.f32 %v2060, 0.5
        %v2065 = vmul.f32 %v2061, 0.5
        %v2066 = vmul.f32 %v2062, 0.5
        %v2067 = vmul.f32 %v2027, %v2063
        %v2068 = vmul.f32 %v2029, %v2064
        %v2069 = vmul.f32 %v2031, %v2065
        %v2070 = vmul.f32 %v2033, %v2066
        %v2071 = vpack.c.bf16 %v2069, %v2067
        %v2072 = vpack.c.bf16 %v2070, %v2068
        %v2073 = vld [vmem:[%s759] sm:$0xf]
        %v2074 = vld [vmem:[%s759 + $0x4] sm:$0xf]
        %v2075 = vld [vmem:[%s759 + $0x8] sm:$0xf]
        %v2076 = vld [vmem:[%s759 + $0xc] sm:$0xf]
        %v2077 = vld [vmem:[%s759 + $0x10] sm:$0xf]
        %v2078 = vld [vmem:[%s759 + $0x14] sm:$0xf]
        %v2079 = vld [vmem:[%s759 + $0x18] sm:$0xf]
        %v2080 = vld [vmem:[%s759 + $0x1c] sm:$0xf]
        %v2081 = vld [vmem:[%s759 + $0x20] sm:$0xf]
        %v2082 = vld [vmem:[%s759 + $0x24] sm:$0xf]
        %v2083 = vld [vmem:[%s759 + $0x28] sm:$0xf]
        %v2084 = vld [vmem:[%s759 + $0x2c] sm:$0xf]
        %v2085 = vld [vmem:[%s759 + $0x30] sm:$0xf]
        %v2086 = vld [vmem:[%s759 + $0x34] sm:$0xf]
        %v2087 = vld [vmem:[%s759 + $0x38] sm:$0xf]
        %v2088 = vld [vmem:[%s759 + $0x3c] sm:$0xf]
        %v2089 = vld [vmem:[%s759 + $0x40] sm:$0xf]
        %v2090 = vld [vmem:[%s759 + $0x44] sm:$0xf]
        %v2091 = vld [vmem:[%s759 + $0x48] sm:$0xf]
        %v2092 = vld [vmem:[%s759 + $0x4c] sm:$0xf]
        %v2093 = vld [vmem:[%s759 + $0x50] sm:$0xf]
        %v2094 = vld [vmem:[%s759 + $0x54] sm:$0xf]
        %v2095 = vld [vmem:[%s759 + $0x58] sm:$0xf]
        %v2096 = vld [vmem:[%s759 + $0x5c] sm:$0xf]
        %v2097 = vld [vmem:[%s759 + $0x60] sm:$0xf]
        %v2098 = vld [vmem:[%s759 + $0x64] sm:$0xf]
        %v2099 = vld [vmem:[%s759 + $0x68] sm:$0xf]
        %v2100 = vld [vmem:[%s759 + $0x6c] sm:$0xf]
        %v2101 = vld [vmem:[%s759 + $0x70] sm:$0xf]
        %v2102 = vld [vmem:[%s759 + $0x74] sm:$0xf]
        %v2103 = vld [vmem:[%s759 + $0x78] sm:$0xf]
        %v2104 = vld [vmem:[%s759 + $0x7c] sm:$0xf]
        %v2105 = vld [vmem:[%s882] sm:$0x1]
        %v2107 = vlaneseq
        %v2108 = vshrl.u32 %v2107, 7
        %v2109 = vsub.s32 0, %v2108
        %v2110 = vrot.slane %v2105, %v2109
        %v2144 = vunpack.c.l.b16 %v2073
        %v2145 = vunpack.c.l.b16 %v2074
        %v2146 = vunpack.c.l.b16 %v2075
        %v2147 = vunpack.c.l.b16 %v2076
        %v2148 = vunpack.c.l.b16 %v2077
        %v2149 = vunpack.c.l.b16 %v2078
        %v2150 = vunpack.c.l.b16 %v2079
        %v2151 = vunpack.c.l.b16 %v2080
        %v2152 = vunpack.c.l.b16 %v2081
        %v2153 = vunpack.c.l.b16 %v2082
        %v2154 = vunpack.c.l.b16 %v2083
        %v2155 = vunpack.c.l.b16 %v2084
        %v2156 = vunpack.c.l.b16 %v2085
        %v2157 = vunpack.c.l.b16 %v2086
        %v2158 = vunpack.c.l.b16 %v2087
        %v2159 = vunpack.c.l.b16 %v2088
        %v2160 = vunpack.c.l.b16 %v2089
        %v2161 = vunpack.c.l.b16 %v2090
        %v2162 = vunpack.c.l.b16 %v2091
        %v2163 = vunpack.c.l.b16 %v2092
        %v2164 = vunpack.c.l.b16 %v2093
        %v2165 = vunpack.c.l.b16 %v2094
        %v2166 = vunpack.c.l.b16 %v2095
        %v2167 = vunpack.c.l.b16 %v2096
        %v2168 = vunpack.c.l.b16 %v2097
        %v2169 = vunpack.c.l.b16 %v2098
        %v2170 = vunpack.c.l.b16 %v2099
        %v2171 = vunpack.c.l.b16 %v2100
        %v2172 = vunpack.c.l.b16 %v2101
        %v2173 = vunpack.c.l.b16 %v2102
        %v2174 = vunpack.c.l.b16 %v2103
        %v2175 = vunpack.c.l.b16 %v2104
        %v2176 = vpack.c.b16 %v2145, %v2144
        %v2177 = vpack.c.b16 %v2147, %v2146
        %v2178 = vpack.c.b16 %v2149, %v2148
        %v2179 = vpack.c.b16 %v2151, %v2150
        %v2180 = vpack.c.b16 %v2153, %v2152
        %v2181 = vpack.c.b16 %v2155, %v2154
        %v2182 = vpack.c.b16 %v2157, %v2156
        %v2183 = vpack.c.b16 %v2159, %v2158
        %v2184 = vpack.c.b16 %v2161, %v2160
        %v2185 = vpack.c.b16 %v2163, %v2162
        %v2186 = vpack.c.b16 %v2165, %v2164
        %v2187 = vpack.c.b16 %v2167, %v2166
        %v2188 = vpack.c.b16 %v2169, %v2168
        %v2189 = vpack.c.b16 %v2171, %v2170
        %v2190 = vpack.c.b16 %v2173, %v2172
        %v2191 = vpack.c.b16 %v2175, %v2174
        %2208 = vmatprep.subr.bf16.mxu0 0
        %2209 = vmatpush1.bf16.msra.mxu0 %v2176
        %2210 = vmatprep.subr.bf16.mxu0 0
        %2211 = vmatpush1.bf16.msra.mxu0 %v2177
        %2212 = vmatprep.subr.bf16.mxu0 0
        %2213 = vmatpush1.bf16.msra.mxu0 %v2178
        %2214 = vmatprep.subr.bf16.mxu0 0
        %2215 = vmatpush1.bf16.msra.mxu0 %v2179
        %2216 = vmatprep.subr.bf16.mxu0 0
        %2217 = vmatpush1.bf16.msra.mxu0 %v2180
        %2218 = vmatprep.subr.bf16.mxu0 0
        %2219 = vmatpush1.bf16.msra.mxu0 %v2181
        %2220 = vmatprep.subr.bf16.mxu0 0
        %2221 = vmatpush1.bf16.msra.mxu0 %v2182
        %2222 = vmatprep.subr.bf16.mxu0 0
        %2223 = vmatpush1.bf16.msra.mxu0 %v2183
        %2224 = vmatprep.subr.bf16.mxu0 0
        %2225 = vmatpush1.bf16.msra.mxu0 %v2184
        %2226 = vmatprep.subr.bf16.mxu0 0
        %2227 = vmatpush1.bf16.msra.mxu0 %v2185
        %2228 = vmatprep.subr.bf16.mxu0 0
        %2229 = vmatpush1.bf16.msra.mxu0 %v2186
        %2230 = vmatprep.subr.bf16.mxu0 0
        %2231 = vmatpush1.bf16.msra.mxu0 %v2187
        %2232 = vmatprep.subr.bf16.mxu0 0
        %2233 = vmatpush1.bf16.msra.mxu0 %v2188
        %2234 = vmatprep.subr.bf16.mxu0 0
        %2235 = vmatpush1.bf16.msra.mxu0 %v2189
        %2236 = vmatprep.subr.bf16.mxu0 0
        %2237 = vmatpush1.bf16.msra.mxu0 %v2190
        %2238 = vmatprep.subr.bf16.mxu0 0
        %2239 = vmatpush1.bf16.msra.mxu0 %v2191
        %2240 = vmatprep.mubr.bf16.mxu0 %v2072
        %2241 = vmatmul.mubr.bf16.gmra.mrb[0].mxu0 %v2071
        %v2242 = vpop.f32.mrb[0].mxu0
        %v2243 = vadd.f32 %v2110, %v2242
        %v2244 = vpop.f32.mrb[0].mxu0
        %v2245 = vpop.f32.mrb[0].mxu0
        %v2246 = vadd.f32 %v2110, %v2245
        %v2247 = vpop.f32.mrb[0].mxu0
        %2248 = vdwg.mxu0
        %v2249 = vadd.f32 %v2243, %v1881
        %v2250 = vadd.f32 %v2246, %v1882
        %v2251 = vld [vmem:[%s885] sm:$0x1]
        %v2252 = vld [vmem:[%s888] sm:$0x1]
        %2253 = vadd.xlane.f32.xlu0 %v2249
        %v2254 = vpop.xlane.xlu0 %2253
        %2255 = vadd.xlane.f32.xlu0 %v2250
        %v2256 = vpop.xlane.xlu0 %2255
        %v2257 = vmul.f32 %v2254, %v1848
        %v2258 = vmul.f32 %v2256, %v1848
        %v2259 = vsub.f32 %v2249, %v2257
        %v2260 = vsub.f32 %v2250, %v2258
        %v2261 = vmul.f32 %v2259, %v2259
        %v2262 = vmul.f32 %v2260, %v2260
        %2263 = vadd.xlane.f32.xlu0 %v2261
        %v2264 = vpop.xlane.xlu0 %2263
        %2265 = vadd.xlane.f32.xlu0 %v2262
        %v2266 = vpop.xlane.xlu0 %2265
        %v2267 = vmul.f32 %v2264, %v1848
        %v2268 = vmul.f32 %v2266, %v1848
        %v2269 = vadd.f32 %v2267, 1e-05
        %v2270 = vadd.f32 %v2268, 1e-05
        %v2271 = vrsqrt.pop %v2269
        %v2272 = vrsqrt.pop %v2270
        %v2273 = vmul.f32 %v2259, %v2271
        %v2274 = vmul.f32 %v2260, %v2272
        %v2276 = vlaneseq
        %v2277 = vshrl.u32 %v2276, 7
        %v2278 = vsub.s32 0, %v2277
        %v2279 = vrot.slane %v2251, %v2278
        %v2281 = vmul.f32 %v2273, %v2279
        %v2282 = vmul.f32 %v2274, %v2279
        %v2284 = vlaneseq
        %v2285 = vshrl.u32 %v2284, 7
        %v2286 = vsub.s32 0, %v2285
        %v2287 = vrot.slane %v2252, %v2286
        %v2289 = vadd.f32 %v2281, %v2287
        %v2290 = vadd.f32 %v2282, %v2287
        %2291 = vst [vmem:[#allocation10] sm:$0xff] %v2289
        %2292 = vst [vmem:[#allocation10 + $0x8] sm:$0xff] %v2290
        %p2293 = scmp.eq.s32.totalorder %s42, 1
        // Predicated region
        $region117: #{custom_model_forward.1} parent=95 // pred_check
          %p2294 = pneg %p2293
        $region118: #{custom_model_forward.1} parent=95 // pred_check_branch
          %2296 = sbr.rel (%p2294) target = $region120
        $region119: #{custom_model_forward.1} parent=95 // pred_region
          %v2298 = vrot.slane %v2290, 7
          %vm2300 = vcmask 1040384
          %v2301 = vsel %vm2300, %v2289, %v2298
          %v2302 = vpack.c.bf16 %v2301, %v2301
          %v2303 = vld [vmem:[#allocation8] sm:$0xf]
          %v2304 = vld [vmem:[#allocation8 + $0x4] sm:$0xf]
          %v2305 = vld [vmem:[#allocation8 + $0x8] sm:$0xf]
          %v2306 = vld [vmem:[#allocation8 + $0xc] sm:$0xf]
          %v2307 = vld [vmem:[#allocation8 + $0x10] sm:$0xf]
          %v2308 = vld [vmem:[#allocation8 + $0x14] sm:$0xf]
          %v2309 = vld [vmem:[#allocation8 + $0x18] sm:$0xf]
          %v2310 = vld [vmem:[#allocation8 + $0x1c] sm:$0xf]
          %v2311 = vld [vmem:[#allocation8 + $0x20] sm:$0xf]
          %v2312 = vld [vmem:[#allocation8 + $0x24] sm:$0xf]
          %v2313 = vld [vmem:[#allocation8 + $0x28] sm:$0xf]
          %v2314 = vld [vmem:[#allocation8 + $0x2c] sm:$0xf]
          %v2315 = vld [vmem:[#allocation8 + $0x30] sm:$0xf]
          %v2316 = vld [vmem:[#allocation8 + $0x34] sm:$0xf]
          %v2317 = vld [vmem:[#allocation8 + $0x38] sm:$0xf]
          %v2318 = vld [vmem:[#allocation8 + $0x3c] sm:$0xf]
          %v2319 = vld [vmem:[%s17] sm:$0x1]
          %v2321 = vlaneseq
          %v2322 = vshrl.u32 %v2321, 7
          %v2323 = vsub.s32 0, %v2322
          %v2324 = vrot.slane %v2319, %v2323
          %v2342 = vunpack.c.l.b16 %v2303
          %v2343 = vunpack.c.l.b16 %v2304
          %v2344 = vunpack.c.l.b16 %v2305
          %v2345 = vunpack.c.l.b16 %v2306
          %v2346 = vunpack.c.l.b16 %v2307
          %v2347 = vunpack.c.l.b16 %v2308
          %v2348 = vunpack.c.l.b16 %v2309
          %v2349 = vunpack.c.l.b16 %v2310
          %v2350 = vunpack.c.l.b16 %v2311
          %v2351 = vunpack.c.l.b16 %v2312
          %v2352 = vunpack.c.l.b16 %v2313
          %v2353 = vunpack.c.l.b16 %v2314
          %v2354 = vunpack.c.l.b16 %v2315
          %v2355 = vunpack.c.l.b16 %v2316
          %v2356 = vunpack.c.l.b16 %v2317
          %v2357 = vunpack.c.l.b16 %v2318
          %v2358 = vpack.c.b16 %v2343, %v2342
          %v2359 = vpack.c.b16 %v2345, %v2344
          %v2360 = vpack.c.b16 %v2347, %v2346
          %v2361 = vpack.c.b16 %v2349, %v2348
          %v2362 = vpack.c.b16 %v2351, %v2350
          %v2363 = vpack.c.b16 %v2353, %v2352
          %v2364 = vpack.c.b16 %v2355, %v2354
          %v2365 = vpack.c.b16 %v2357, %v2356
          %2374 = vmatprep.subr.bf16.mxu0 0
          %2375 = vmatpush1.bf16.msra.mxu0 %v2358
          %2376 = vmatprep.subr.bf16.mxu0 0
          %2377 = vmatpush1.bf16.msra.mxu0 %v2359
          %2378 = vmatprep.subr.bf16.mxu0 0
          %2379 = vmatpush1.bf16.msra.mxu0 %v2360
          %2380 = vmatprep.subr.bf16.mxu0 0
          %2381 = vmatpush1.bf16.msra.mxu0 %v2361
          %2382 = vmatprep.subr.bf16.mxu0 0
          %2383 = vmatpush1.bf16.msra.mxu0 %v2362
          %2384 = vmatprep.subr.bf16.mxu0 0
          %2385 = vmatpush1.bf16.msra.mxu0 %v2363
          %2386 = vmatprep.subr.bf16.mxu0 0
          %2387 = vmatpush1.bf16.msra.mxu0 %v2364
          %2388 = vmatprep.subr.bf16.mxu0 0
          %2389 = vmatpush1.bf16.msra.mxu0 %v2365
          %2390 = vmatprep.subr.bf16.mxu0 0
          %2391 = vmatpush1.bf16.msra.mxu0 0
          %2392 = vmatprep.subr.bf16.mxu0 0
          %2393 = vmatpush1.bf16.msra.mxu0 0
          %2394 = vmatprep.subr.bf16.mxu0 0
          %2395 = vmatpush1.bf16.msra.mxu0 0
          %2396 = vmatprep.subr.bf16.mxu0 0
          %2397 = vmatpush1.bf16.msra.mxu0 0
          %2398 = vmatprep.subr.bf16.mxu0 0
          %2399 = vmatpush1.bf16.msra.mxu0 0
          %2400 = vmatprep.subr.bf16.mxu0 0
          %2401 = vmatpush1.bf16.msra.mxu0 0
          %2402 = vmatprep.subr.bf16.mxu0 0
          %2403 = vmatpush1.bf16.msra.mxu0 0
          %2404 = vmatprep.subr.bf16.mxu0 0
          %2405 = vmatpush1.bf16.msra.mxu0 0
          %2406 = vmatprep.mubr.bf16.mxu0 0
          %2407 = vmatmul.mubr.bf16.gmra.mrb[0].mxu0 %v2302
          %v2408 = vpop.f32.mrb[0].mxu0
          %v2409 = vadd.f32 %v2324, %v2408
          %v2410 = vpop.f32.mrb[0].mxu0
          %v2411 = vpop.f32.mrb[0].mxu0
          %v2412 = vpop.f32.mrb[0].mxu0
          %2413 = vdwg.mxu0
          %2414 = vst [vmem:[#allocation11] sm:$0x3] %v2409
          %v2415 = vlaneseq
          %v2416 = vand.u32 %v2415, 127
          %vm2417 = vcmp.lt.s32.totalorder %v2416, 5
          %v2418 = vsel %vm2417, %v2409, -1e+30
          %v2419 = vsel %vm1231, %v2418, -inf
          %2420 = vmax.xlane.f32.xlu0 %v2419
          %v2421 = vpop.xlane.xlu0 %2420
          %v2422 = vsub.f32 %v2418, %v2421
          %v2423 = vmul.f32 %v2422, 1.442695
          %v2424 = vpow.pop %v2423
          %v2425 = vsel %vm1231, %v2424, 0.0
          %2426 = vadd.xlane.f32.xlu0 %v2425
          %v2427 = vpop.xlane.xlu0 %2426
          %v2428 = vlog2.pop %v2427
          %v2429 = vmul.f32 %v2428, 0.6931472
          %v2430 = vsub.f32 %v2422, %v2429
          %v2431 = vld [vmem:[%s18] sm:$0x3]
          %2432 = vset.pattern.permute.xlu0 0
          %2433 = vperm.xlu0 %2432, %v2431
          %v2434 = vpop.permute.xlu0 %2433
          %vm2435 = vcmp.eq.s32.totalorder %v2416, %v2434
          %v2436 = vsel %vm2435, 1, 0
          %v2437 = vcvt.s32.f32 %v2436
          %v2438 = vmul.f32 %v2437, %v2430
          %v2439 = vsel %vm1231, %v2438, 0.0
          %2440 = vadd.xlane.f32.xlu0 %v2439
          %v2441 = vpop.xlane.xlu0 %2440
          %v2442 = vsub.f32 0.0, %v2441
          %v2443 = vsel %vm1231, %v2442, 0.0
          %v2444 = vrot.slane %v2443, 4
          %v2445 = vadd.f32 %v2443, %v2444
          %v2446 = vrot.slane %v2445, 2
          %v2447 = vadd.f32 %v2445, %v2446
          %v2448 = vrot.slane %v2447, 1
          %v2449 = vadd.f32 %v2447, %v2448
          %v2450 = vrcp.pop 2.0
          %v2451 = vmul.f32 %v2449, %v2450
          %vm2452 = vcmask 0
          %2453 = vst.msk [vmem:[#allocation13] sm:$0x1] %vm2452, %v2451
        $region120: #{custom_model_forward.1} parent=95 // pred_fallthru
          _
        // Predicated region
        $region121: #{custom_model_forward.1} parent=95 // pred_check
          %p2454 = pneg %p514
        $region122: #{custom_model_forward.1} parent=95 // pred_check_branch
          %2456 = sbr.rel (%p2454) target = $region124
        $region123: #{custom_model_forward.1} parent=95 // pred_region
          %s2458 = ssub.s32 256, 256
          %2459 = vsyncadd [#allocation4], %s2458
          %s2460 = sshll.u32 [#allocation10], 4
          %s2461 = int_to_ptr.vmem [resolvable:$true] %s2460
          %2466 = dma.vmem_to_hbm [thread:$0]  %s2461, 256, %s19, [#allocation4], 128, 128, 8
        $region124: #{custom_model_forward.1} parent=95 // pred_fallthru
          _
        // Predicated region
        $region125: #{custom_model_forward.1} parent=95 // pred_check
          %p2467 = pneg %p535
        $region126: #{custom_model_forward.1} parent=95 // pred_check_branch
          %2469 = sbr.rel (%p2467) target = $region128
        $region127: #{custom_model_forward.1} parent=95 // pred_region
          %s2471 = ssub.s32 32, 32
          %2472 = vsyncadd [#allocation12], %s2471
          %s2474 = sshll.u32 [#allocation11], 4
          %s2475 = int_to_ptr.vmem [resolvable:$true] %s2474
          %2477 = dma.vmem_to_hbm [thread:$0]  %s2475, 32, %s20, [#allocation12]
        $region128: #{custom_model_forward.1} parent=95 // pred_fallthru
          _
        // Predicated region
        $region129: #{custom_model_forward.1} parent=95 // pred_check
          %p2478 = pneg %p556
        $region130: #{custom_model_forward.1} parent=95 // pred_check_branch
          %2480 = sbr.rel (%p2478) target = $region132
        $region131: #{custom_model_forward.1} parent=95 // pred_region
          %s2482 = ssub.s32 16, 16
          %2483 = vsyncadd [#allocation12], %s2482
          %s2485 = sshll.u32 [#allocation13], 4
          %s2486 = int_to_ptr.vmem [resolvable:$true] %s2485
          %2488 = dma.vmem_to_hbm [thread:$0]  %s2486, 16, %s21, [#allocation12]
        $region132: #{custom_model_forward.1} parent=95 // pred_fallthru
          _
        // Predicated region
        $region133: #{custom_model_forward.1} parent=95 // pred_check
          %p2489 = pneg %p514
        $region134: #{custom_model_forward.1} parent=95 // pred_check_branch
          %2491 = sbr.rel (%p2489) target = $region136
        $region135: #{custom_model_forward.1} parent=95 // pred_region
          %2492 = dma.done [#allocation4], 256
        $region136: #{custom_model_forward.1} parent=95 // pred_fallthru
          _
        // Predicated region
        $region137: #{custom_model_forward.1} parent=95 // pred_check
          %p2493 = pneg %p535
        $region138: #{custom_model_forward.1} parent=95 // pred_check_branch
          %2495 = sbr.rel (%p2493) target = $region140
        $region139: #{custom_model_forward.1} parent=95 // pred_region
          %2496 = dma.done [#allocation12], 32
        $region140: #{custom_model_forward.1} parent=95 // pred_fallthru
          _
        // Predicated region
        $region141: #{custom_model_forward.1} parent=95 // pred_check
          %p2497 = pneg %p556
        $region142: #{custom_model_forward.1} parent=95 // pred_check_branch
          %2499 = sbr.rel (%p2497) target = $region144
        $region143: #{custom_model_forward.1} parent=95 // pred_region
          %2500 = dma.done [#allocation12], 16
        $region144: #{custom_model_forward.1} parent=95 // pred_fallthru
          _
      $region96: #{custom_model_forward.1} parent=5 // pred_fallthru
        _
      %p2501 = scmp.le.s32.totalorder 2, %s37
      // Predicated region
      $region145: #{custom_model_forward.1} parent=5 // pred_check
        %p2502 = pneg %p2501
      $region146: #{custom_model_forward.1} parent=5 // pred_check_branch
        %2504 = sbr.rel (%p2502) target = $region148
      $region147: #{custom_model_forward.1} parent=5 // pred_region
        %s2505 = ssub.s32 %s37, 2
      $region148: #{custom_model_forward.1} parent=5 // pred_fallthru
        _
    $region6: #{custom_model_forward.1} parent=1 // loop_footer
      %s41 = sadd.s32 1, %s37
    $region7: #{custom_model_forward.1} parent=1 // loop_footer_branch
      %36 = sbr.rel target = $region3
    $region8: #{custom_model_forward.1} parent=1 // loop_exit
      _
    %2506 = vsyncpa [#allocation3], 1
    %s2507 = scalar_lea.sflag [#allocation3], 1
    %2508 = vsyncpa %s2507, 1
    %2509 = vsyncpa [#allocation6], 1
    %s2510 = scalar_lea.sflag [#allocation6], 1
    %2511 = vsyncpa %s2510, 1
    %2512 = vsyncpa [#allocation9], 1
    %2513 = vsyncpa [#allocation4], 1
    %s2514 = scalar_lea.sflag [#allocation4], 1
    %2515 = vsyncpa %s2514, 1
    %2516 = vsyncpa [#allocation12], 1

</llo_original>
